<compile_context>
chip_gen: v7x
topology: tpu7x:2x2x1
jax: 0.10.0
libtpu: 0.0.40
codegen_flags: <defaults>
</compile_context>

<pallas_src>
import functools

import jax
import jax.numpy as jnp
from jax.experimental import pallas as pl
from jax.experimental.pallas import tpu as pltpu


def _encoder_layer_kernel(x_ref, ln1g_ref, ln1b_ref, wqkv_ref, wproj_ref,
                          bproj_ref, ln2g_ref, ln2b_ref, w1_ref, b1_ref,
                          w2_ref, b2_ref, o_ref, *, num_heads, embed_dim,
                          seq_len, block_b):
    f32, bf16 = jnp.float32, jnp.bfloat16
    eps = jnp.float32(1e-5)
    # Note: the PyTorch module scales by embed_dim**-0.5 (not head_dim**-0.5),
    # and its qkv Linear has bias=False — both matched here.
    scale = jnp.float32(embed_dim ** (-0.5))
    hd = embed_dim // num_heads
    Bb, N, C = block_b, seq_len, embed_dim
    Z = Bb * num_heads

    # Load small params once (hoisted; JAX does not CSE broadcast_in_dim).
    ln1g, ln1b = ln1g_ref[...], ln1b_ref[...]
    ln2g, ln2b = ln2g_ref[...], ln2b_ref[...]
    bproj, b1, b2 = bproj_ref[...], b1_ref[...], b2_ref[...]

    def layernorm(v, g, b):
        mu = jnp.mean(v, axis=-1, keepdims=True)
        var = jnp.mean(jnp.square(v - mu), axis=-1, keepdims=True)
        return (v - mu) * jax.lax.rsqrt(var + eps) * g + b

    x = x_ref[...].astype(f32).reshape(Bb * N, C)  # pack batch block into M dim

    # ---------------- attention branch ----------------
    xn = layernorm(x, ln1g, ln1b)
    qkv = jnp.dot(xn.astype(bf16), wqkv_ref[...],
                  preferred_element_type=f32)                      # (Bb*N, 3C)

    def split_heads(t):  # (Bb*N, C) -> (Bb*H, N, hd)
        return (t.reshape(Bb, N, num_heads, hd)
                 .transpose(0, 2, 1, 3)
                 .reshape(Z, N, hd))

    q = split_heads(qkv[:, 0 * C:1 * C]).astype(bf16)
    k = split_heads(qkv[:, 1 * C:2 * C]).astype(bf16)
    v = split_heads(qkv[:, 2 * C:3 * C]).astype(bf16)

    # One batched contraction over all (batch, head) pairs; contracting spec
    # avoids materializing k.T through the XLU.
    s = jnp.einsum('znd,zmd->znm', q, k,
                   preferred_element_type=f32) * scale             # (Z, N, N)
    s = s - jnp.max(s, axis=-1, keepdims=True)
    p = jnp.exp(s)
    p = p * pl.reciprocal(jnp.sum(p, axis=-1, keepdims=True), approx=True)
    # TODO(synk): attention dropout (p=0.1) treated as identity (eval mode).
    ctx = jnp.einsum('znm,zmd->znd', p.astype(bf16), v,
                     preferred_element_type=f32)                   # (Z, N, hd)
    ctx = (ctx.reshape(Bb, num_heads, N, hd)
              .transpose(0, 2, 1, 3)
              .reshape(Bb * N, C))
    attn_out = jnp.dot(ctx.astype(bf16), wproj_ref[...],
                       preferred_element_type=f32) + bproj
    y = x + attn_out  # residual 1

    # ---------------- MLP branch ----------------
    yn = layernorm(y, ln2g, ln2b)
    h1 = jnp.dot(yn.astype(bf16), w1_ref[...],
                 preferred_element_type=f32) + b1
    # exact GELU (erf-based, matches torch.nn.functional.gelu default)
    h1 = 0.5 * h1 * (1.0 + jax.lax.erf(h1 * jnp.float32(0.7071067811865476)))
    # TODO(synk): MLP dropout (p=0.1) treated as identity (eval mode).
    h2 = jnp.dot(h1.astype(bf16), w2_ref[...],
                 preferred_element_type=f32) + b2

    o_ref[...] = (y + h2).reshape(Bb, N, C).astype(o_ref.dtype)  # residual 2


def transformer_encoder_layer(x, params, *, num_heads, block_b=None):
    B, N, C = x.shape
    mlp_dim = params["w1"].shape[1]

    if block_b is None:
        # Pack batch elements per grid step to fill the MXU M dimension, but
        # cap the number of activation rows held in VMEM per step.
        block_b = B
        while block_b > 1 and (block_b * N > 1024 or B % block_b != 0):
            block_b -= 1
    assert B % block_b == 0
    grid = (B // block_b,)

    kernel = functools.partial(_encoder_layer_kernel, num_heads=num_heads,
                               embed_dim=C, seq_len=N, block_b=block_b)

    def fixed(shape):
        nd = len(shape)
        return pl.BlockSpec(shape, lambda b, _nd=nd: (0,) * _nd)

    in_specs = [
        pl.BlockSpec((block_b, N, C), lambda b: (b, 0, 0)),  # x
        fixed((1, C)), fixed((1, C)),                        # ln1 gamma / beta
        fixed((C, 3 * C)),                                   # W_qkv (no bias)
        fixed((C, C)), fixed((1, C)),                        # W_proj, b_proj
        fixed((1, C)), fixed((1, C)),                        # ln2 gamma / beta
        fixed((C, mlp_dim)), fixed((1, mlp_dim)),            # W_fc1, b_fc1
        fixed((mlp_dim, C)), fixed((1, C)),                  # W_fc2, b_fc2
    ]
    out_spec = pl.BlockSpec((block_b, N, C), lambda b: (b, 0, 0))

    return pl.pallas_call(
        kernel,
        out_shape=jax.ShapeDtypeStruct((B, N, C), x.dtype),
        grid_spec=pltpu.PrefetchScalarGridSpec(
            num_scalar_prefetch=0,
            grid=grid,
            in_specs=in_specs,
            out_specs=out_spec,
        ),
        compiler_params=pltpu.CompilerParams(
            dimension_semantics=("parallel",)),
    )(x, params["ln1_g"], params["ln1_b"], params["wqkv"],
      params["wproj"], params["bproj"], params["ln2_g"], params["ln2_b"],
      params["w1"], params["b1"], params["w2"], params["b2"])


def init_params(key, embed_dim, mlp_dim):
    ks = jax.random.split(key, 6)
    s = 0.02
    bf16, f32 = jnp.bfloat16, jnp.float32
    return {
        "ln1_g": jnp.ones((1, embed_dim), f32),
        "ln1_b": jnp.zeros((1, embed_dim), f32),
        # Weights stored in bf16 (MXU-native); biases / LN params stay f32.
        "wqkv": (s * jax.random.normal(ks[0], (embed_dim, 3 * embed_dim), f32)).astype(bf16),
        "wproj": (s * jax.random.normal(ks[1], (embed_dim, embed_dim), f32)).astype(bf16),
        "bproj": s * jax.random.normal(ks[2], (1, embed_dim), f32),
        "ln2_g": jnp.ones((1, embed_dim), f32),
        "ln2_b": jnp.zeros((1, embed_dim), f32),
        "w1": (s * jax.random.normal(ks[3], (embed_dim, mlp_dim), f32)).astype(bf16),
        "b1": s * jax.random.normal(ks[4], (1, mlp_dim), f32),
        "w2": (s * jax.random.normal(ks[5], (mlp_dim, embed_dim), f32)).astype(bf16),
        "b2": jnp.zeros((1, embed_dim), f32),
    }


def reference_forward(x, p, num_heads):
    """Pure-JAX (f32) mirror of the PyTorch forward, dropout in eval mode."""
    B, N, C = x.shape
    hd = C // num_heads
    f32 = jnp.float32

    def ln(v, g, b):
        mu = v.mean(-1, keepdims=True)
        var = ((v - mu) ** 2).mean(-1, keepdims=True)
        return (v - mu) / jnp.sqrt(var + 1e-5) * g + b

    xn = ln(x, p["ln1_g"], p["ln1_b"])
    qkv = xn @ p["wqkv"].astype(f32)
    qkv = qkv.reshape(B, N, 3, num_heads, hd).transpose(2, 0, 3, 1, 4)
    q, k, v = qkv[0], qkv[1], qkv[2]                       # (B, H, N, hd)
    attn = jnp.einsum("bhnd,bhmd->bhnm", q, k) * (C ** -0.5)
    attn = jax.nn.softmax(attn, axis=-1)
    out = jnp.einsum("bhnm,bhmd->bhnd", attn, v)
    out = out.transpose(0, 2, 1, 3).reshape(B, N, C)
    out = out @ p["wproj"].astype(f32) + p["bproj"]
    y = x + out
    yn = ln(y, p["ln2_g"], p["ln2_b"])
    h1 = jax.nn.gelu(yn @ p["w1"].astype(f32) + p["b1"], approximate=False)
    h2 = h1 @ p["w2"].astype(f32) + p["b2"]
    return y + h2


if __name__ == "__main__":
    # Small, lane-aligned ViT-style shapes: batch=2, seq=8, embed=128.
    B, N, C = 2, 8, 128
    num_heads, mlp_dim = 4, 256

    key = jax.random.PRNGKey(0)
    kx, kp = jax.random.split(key)
    x = jax.random.normal(kx, (B, N, C), jnp.float32)
    params = init_params(kp, C, mlp_dim)

    out = transformer_encoder_layer(x, params, num_heads=num_heads)
    out = jax.block_until_ready(out)

    ref = reference_forward(x, params, num_heads)
    assert out.shape == (B, N, C)
    # Tolerance accounts for bf16 matmul inputs (f32 accumulation) and the
    # approximate (EUP) softmax reciprocal.
    assert jnp.allclose(out, ref, atol=2e-2, rtol=2e-2), "mismatch vs reference"

    print("KERNEL_OK")
</pallas_src>

<mosaic_0001>
module attributes {stable_mosaic.version = 11 : i64} {
  func.func @_encoder_layer_kernel(%arg0: i32, %arg1: memref<2x8x128xf32, #tpu.memory_space<vmem>>, %arg2: memref<1x128xf32, #tpu.memory_space<vmem>>, %arg3: memref<1x128xf32, #tpu.memory_space<vmem>>, %arg4: memref<128x384xbf16, #tpu.memory_space<vmem>>, %arg5: memref<128x128xbf16, #tpu.memory_space<vmem>>, %arg6: memref<1x128xf32, #tpu.memory_space<vmem>>, %arg7: memref<1x128xf32, #tpu.memory_space<vmem>>, %arg8: memref<1x128xf32, #tpu.memory_space<vmem>>, %arg9: memref<128x256xbf16, #tpu.memory_space<vmem>>, %arg10: memref<1x256xf32, #tpu.memory_space<vmem>>, %arg11: memref<256x128xbf16, #tpu.memory_space<vmem>>, %arg12: memref<1x128xf32, #tpu.memory_space<vmem>>, %arg13: memref<2x8x128xf32, #tpu.memory_space<vmem>>) attributes {dimension_semantics = [#tpu.dimension_semantics<parallel>], iteration_bounds = array<i64: 1>, scalar_prefetch = 0 : i64, scratch_operands = 0 : i64, tpu.core_type = #tpu.core_type<tc>, window_params = [{transform_indices = @transform_0, window_bounds = array<i64: 2, 8, 128>}, {pipeline_mode = #tpu.pipeline_mode<synchronous>, transform_indices = @transform_1, window_bounds = array<i64: 1, 128>}, {pipeline_mode = #tpu.pipeline_mode<synchronous>, transform_indices = @transform_2, window_bounds = array<i64: 1, 128>}, {pipeline_mode = #tpu.pipeline_mode<synchronous>, transform_indices = @transform_3, window_bounds = array<i64: 128, 384>}, {pipeline_mode = #tpu.pipeline_mode<synchronous>, transform_indices = @transform_4, window_bounds = array<i64: 128, 128>}, {pipeline_mode = #tpu.pipeline_mode<synchronous>, transform_indices = @transform_5, window_bounds = array<i64: 1, 128>}, {pipeline_mode = #tpu.pipeline_mode<synchronous>, transform_indices = @transform_6, window_bounds = array<i64: 1, 128>}, {pipeline_mode = #tpu.pipeline_mode<synchronous>, transform_indices = @transform_7, window_bounds = array<i64: 1, 128>}, {pipeline_mode = #tpu.pipeline_mode<synchronous>, transform_indices = @transform_8, window_bounds = array<i64: 128, 256>}, {pipeline_mode = #tpu.pipeline_mode<synchronous>, transform_indices = @transform_9, window_bounds = array<i64: 1, 256>}, {pipeline_mode = #tpu.pipeline_mode<synchronous>, transform_indices = @transform_10, window_bounds = array<i64: 256, 128>}, {pipeline_mode = #tpu.pipeline_mode<synchronous>, transform_indices = @transform_11, window_bounds = array<i64: 1, 128>}, {transform_indices = @transform_12, window_bounds = array<i64: 2, 8, 128>}]} {
    %c0 = arith.constant 0 : index
    %c0_0 = arith.constant 0 : index
    %0 = vector.load %arg2[%c0, %c0_0] : memref<1x128xf32, #tpu.memory_space<vmem>>, vector<1x128xf32>
    %c0_1 = arith.constant 0 : index
    %c0_2 = arith.constant 0 : index
    %1 = vector.load %arg3[%c0_1, %c0_2] : memref<1x128xf32, #tpu.memory_space<vmem>>, vector<1x128xf32>
    %c0_3 = arith.constant 0 : index
    %c0_4 = arith.constant 0 : index
    %2 = vector.load %arg7[%c0_3, %c0_4] : memref<1x128xf32, #tpu.memory_space<vmem>>, vector<1x128xf32>
    %c0_5 = arith.constant 0 : index
    %c0_6 = arith.constant 0 : index
    %3 = vector.load %arg8[%c0_5, %c0_6] : memref<1x128xf32, #tpu.memory_space<vmem>>, vector<1x128xf32>
    %c0_7 = arith.constant 0 : index
    %c0_8 = arith.constant 0 : index
    %4 = vector.load %arg6[%c0_7, %c0_8] : memref<1x128xf32, #tpu.memory_space<vmem>>, vector<1x128xf32>
    %c0_9 = arith.constant 0 : index
    %c0_10 = arith.constant 0 : index
    %5 = vector.load %arg10[%c0_9, %c0_10] : memref<1x256xf32, #tpu.memory_space<vmem>>, vector<1x256xf32>
    %c0_11 = arith.constant 0 : index
    %c0_12 = arith.constant 0 : index
    %6 = vector.load %arg12[%c0_11, %c0_12] : memref<1x128xf32, #tpu.memory_space<vmem>>, vector<1x128xf32>
    %c0_13 = arith.constant 0 : index
    %c0_14 = arith.constant 0 : index
    %c0_15 = arith.constant 0 : index
    %7 = vector.load %arg1[%c0_13, %c0_14, %c0_15] : memref<2x8x128xf32, #tpu.memory_space<vmem>>, vector<2x8x128xf32>
    %8 = vector.shape_cast %7 : vector<2x8x128xf32> to vector<16x128xf32>
    %cst = arith.constant dense<0.000000e+00> : vector<16xf32>
    %9 = vector.multi_reduction <add>, %8, %cst [1] : vector<16x128xf32> to vector<16xf32>
    %10 = vector.shape_cast %9 : vector<16xf32> to vector<16x1xf32>
    %cst_16 = arith.constant 1.280000e+02 : f32
    %11 = vector.broadcast %cst_16 : f32 to vector<16x1xf32>
    %12 = arith.divf %10, %11 : vector<16x1xf32>
    %13 = vector.broadcast %12 : vector<16x1xf32> to vector<16x128xf32>
    %14 = arith.subf %8, %13 : vector<16x128xf32>
    %15 = arith.mulf %14, %14 : vector<16x128xf32>
    %cst_17 = arith.constant dense<0.000000e+00> : vector<16xf32>
    %16 = vector.multi_reduction <add>, %15, %cst_17 [1] : vector<16x128xf32> to vector<16xf32>
    %17 = vector.shape_cast %16 : vector<16xf32> to vector<16x1xf32>
    %cst_18 = arith.constant 1.280000e+02 : f32
    %18 = vector.broadcast %cst_18 : f32 to vector<16x1xf32>
    %19 = arith.divf %17, %18 : vector<16x1xf32>
    %20 = vector.broadcast %12 : vector<16x1xf32> to vector<16x128xf32>
    %21 = arith.subf %8, %20 : vector<16x128xf32>
    %cst_19 = arith.constant 9.99999974E-6 : f32
    %22 = vector.broadcast %cst_19 : f32 to vector<16x1xf32>
    %23 = arith.addf %19, %22 : vector<16x1xf32>
    %24 = math.rsqrt %23 : vector<16x1xf32>
    %25 = vector.broadcast %24 : vector<16x1xf32> to vector<16x128xf32>
    %26 = arith.mulf %21, %25 : vector<16x128xf32>
    %27 = vector.broadcast %0 : vector<1x128xf32> to vector<16x128xf32>
    %28 = arith.mulf %26, %27 : vector<16x128xf32>
    %29 = vector.broadcast %1 : vector<1x128xf32> to vector<16x128xf32>
    %30 = arith.addf %28, %29 : vector<16x128xf32>
    %31 = arith.truncf %30 : vector<16x128xf32> to vector<16x128xbf16>
    %c0_20 = arith.constant 0 : index
    %c0_21 = arith.constant 0 : index
    %32 = vector.load %arg4[%c0_20, %c0_21] : memref<128x384xbf16, #tpu.memory_space<vmem>>, vector<128x384xbf16>
    %cst_22 = arith.constant dense<0.000000e+00> : vector<16x384xf32>
    %33 = tpu.matmul %31, %32, %cst_22 {dimension_numbers = #tpu.dot_dimension_numbers<[1], [0], [0], [1], [0, 0, 1, 1], [], []>} : vector<16x128xbf16>, vector<128x384xbf16>, vector<16x384xf32> -> vector<16x384xf32>
    %34 = vector.extract_strided_slice %33 {offsets = [0, 0], sizes = [16, 128], strides = [1, 1]} : vector<16x384xf32> to vector<16x128xf32>
    %35 = vector.shape_cast %34 : vector<16x128xf32> to vector<2x8x4x32xf32>
    %36 = tpu.transpose %35, [0, 2, 1, 3] : vector<2x8x4x32xf32> -> vector<2x4x8x32xf32>
    %37 = vector.shape_cast %36 : vector<2x4x8x32xf32> to vector<8x8x32xf32>
    %38 = arith.truncf %37 : vector<8x8x32xf32> to vector<8x8x32xbf16>
    %39 = vector.extract_strided_slice %33 {offsets = [0, 128], sizes = [16, 128], strides = [1, 1]} : vector<16x384xf32> to vector<16x128xf32>
    %40 = vector.shape_cast %39 : vector<16x128xf32> to vector<2x8x4x32xf32>
    %41 = tpu.transpose %40, [0, 2, 1, 3] : vector<2x8x4x32xf32> -> vector<2x4x8x32xf32>
    %42 = vector.shape_cast %41 : vector<2x4x8x32xf32> to vector<8x8x32xf32>
    %43 = arith.truncf %42 : vector<8x8x32xf32> to vector<8x8x32xbf16>
    %44 = vector.extract_strided_slice %33 {offsets = [0, 256], sizes = [16, 128], strides = [1, 1]} : vector<16x384xf32> to vector<16x128xf32>
    %45 = vector.shape_cast %44 : vector<16x128xf32> to vector<2x8x4x32xf32>
    %46 = tpu.transpose %45, [0, 2, 1, 3] : vector<2x8x4x32xf32> -> vector<2x4x8x32xf32>
    %47 = vector.shape_cast %46 : vector<2x4x8x32xf32> to vector<8x8x32xf32>
    %48 = arith.truncf %47 : vector<8x8x32xf32> to vector<8x8x32xbf16>
    "tpu.trace_start"() <{level = 10 : i32, message = "znd,zmd->znm"}> : () -> ()
    %cst_23 = arith.constant dense<0.000000e+00> : vector<8x8x8xf32>
    %49 = tpu.matmul %38, %43, %cst_23 {dimension_numbers = #tpu.dot_dimension_numbers<[2], [2], [1], [1], [0, 0, 0, 1, 1, 1], [0], [0]>} : vector<8x8x32xbf16>, vector<8x8x32xbf16>, vector<8x8x8xf32> -> vector<8x8x8xf32>
    "tpu.trace_stop"() : () -> ()
    %cst_24 = arith.constant 0.0883883461 : f32
    %50 = vector.broadcast %cst_24 : f32 to vector<8x8x8xf32>
    %51 = arith.mulf %49, %50 : vector<8x8x8xf32>
    %cst_25 = arith.constant dense<0xFF800000> : vector<8x8xf32>
    %52 = vector.multi_reduction <maximumf>, %51, %cst_25 [2] : vector<8x8x8xf32> to vector<8x8xf32>
    %53 = vector.shape_cast %52 : vector<8x8xf32> to vector<8x8x1xf32>
    %54 = vector.broadcast %53 : vector<8x8x1xf32> to vector<8x8x8xf32>
    %55 = arith.subf %51, %54 : vector<8x8x8xf32>
    %56 = math.exp %55 : vector<8x8x8xf32>
    %cst_26 = arith.constant dense<0.000000e+00> : vector<8x8xf32>
    %57 = vector.multi_reduction <add>, %56, %cst_26 [2] : vector<8x8x8xf32> to vector<8x8xf32>
    %58 = vector.shape_cast %57 : vector<8x8xf32> to vector<8x8x1xf32>
    %59 = tpu.reciprocal %58 {approx = true} : vector<8x8x1xf32> -> vector<8x8x1xf32>
    %60 = vector.broadcast %59 : vector<8x8x1xf32> to vector<8x8x8xf32>
    %61 = arith.mulf %56, %60 : vector<8x8x8xf32>
    %62 = arith.truncf %61 : vector<8x8x8xf32> to vector<8x8x8xbf16>
    "tpu.trace_start"() <{level = 10 : i32, message = "znm,zmd->znd"}> : () -> ()
    %cst_27 = arith.constant dense<0.000000e+00> : vector<8x8x32xf32>
    %63 = tpu.matmul %62, %48, %cst_27 {dimension_numbers = #tpu.dot_dimension_numbers<[2], [1], [1], [2], [0, 0, 0, 1, 1, 2], [0], [0]>} : vector<8x8x8xbf16>, vector<8x8x32xbf16>, vector<8x8x32xf32> -> vector<8x8x32xf32>
    "tpu.trace_stop"() : () -> ()
    %64 = vector.shape_cast %63 : vector<8x8x32xf32> to vector<2x4x8x32xf32>
    %65 = tpu.transpose %64, [0, 2, 1, 3] : vector<2x4x8x32xf32> -> vector<2x8x4x32xf32>
    %66 = vector.shape_cast %65 : vector<2x8x4x32xf32> to vector<16x128xf32>
    %67 = arith.truncf %66 : vector<16x128xf32> to vector<16x128xbf16>
    %c0_28 = arith.constant 0 : index
    %c0_29 = arith.constant 0 : index
    %68 = vector.load %arg5[%c0_28, %c0_29] : memref<128x128xbf16, #tpu.memory_space<vmem>>, vector<128x128xbf16>
    %cst_30 = arith.constant dense<0.000000e+00> : vector<16x128xf32>
    %69 = tpu.matmul %67, %68, %cst_30 {dimension_numbers = #tpu.dot_dimension_numbers<[1], [0], [0], [1], [0, 0, 1, 1], [], []>} : vector<16x128xbf16>, vector<128x128xbf16>, vector<16x128xf32> -> vector<16x128xf32>
    %70 = vector.broadcast %4 : vector<1x128xf32> to vector<16x128xf32>
    %71 = arith.addf %69, %70 : vector<16x128xf32>
    %72 = arith.addf %8, %71 : vector<16x128xf32>
    %cst_31 = arith.constant dense<0.000000e+00> : vector<16xf32>
    %73 = vector.multi_reduction <add>, %72, %cst_31 [1] : vector<16x128xf32> to vector<16xf32>
    %74 = vector.shape_cast %73 : vector<16xf32> to vector<16x1xf32>
    %cst_32 = arith.constant 1.280000e+02 : f32
    %75 = vector.broadcast %cst_32 : f32 to vector<16x1xf32>
    %76 = arith.divf %74, %75 : vector<16x1xf32>
    %77 = vector.broadcast %76 : vector<16x1xf32> to vector<16x128xf32>
    %78 = arith.subf %72, %77 : vector<16x128xf32>
    %79 = arith.mulf %78, %78 : vector<16x128xf32>
    %cst_33 = arith.constant dense<0.000000e+00> : vector<16xf32>
    %80 = vector.multi_reduction <add>, %79, %cst_33 [1] : vector<16x128xf32> to vector<16xf32>
    %81 = vector.shape_cast %80 : vector<16xf32> to vector<16x1xf32>
    %cst_34 = arith.constant 1.280000e+02 : f32
    %82 = vector.broadcast %cst_34 : f32 to vector<16x1xf32>
    %83 = arith.divf %81, %82 : vector<16x1xf32>
    %84 = vector.broadcast %76 : vector<16x1xf32> to vector<16x128xf32>
    %85 = arith.subf %72, %84 : vector<16x128xf32>
    %cst_35 = arith.constant 9.99999974E-6 : f32
    %86 = vector.broadcast %cst_35 : f32 to vector<16x1xf32>
    %87 = arith.addf %83, %86 : vector<16x1xf32>
    %88 = math.rsqrt %87 : vector<16x1xf32>
    %89 = vector.broadcast %88 : vector<16x1xf32> to vector<16x128xf32>
    %90 = arith.mulf %85, %89 : vector<16x128xf32>
    %91 = vector.broadcast %2 : vector<1x128xf32> to vector<16x128xf32>
    %92 = arith.mulf %90, %91 : vector<16x128xf32>
    %93 = vector.broadcast %3 : vector<1x128xf32> to vector<16x128xf32>
    %94 = arith.addf %92, %93 : vector<16x128xf32>
    %95 = arith.truncf %94 : vector<16x128xf32> to vector<16x128xbf16>
    %c0_36 = arith.constant 0 : index
    %c0_37 = arith.constant 0 : index
    %96 = vector.load %arg9[%c0_36, %c0_37] : memref<128x256xbf16, #tpu.memory_space<vmem>>, vector<128x256xbf16>
    %cst_38 = arith.constant dense<0.000000e+00> : vector<16x256xf32>
    %97 = tpu.matmul %95, %96, %cst_38 {dimension_numbers = #tpu.dot_dimension_numbers<[1], [0], [0], [1], [0, 0, 1, 1], [], []>} : vector<16x128xbf16>, vector<128x256xbf16>, vector<16x256xf32> -> vector<16x256xf32>
    %98 = vector.broadcast %5 : vector<1x256xf32> to vector<16x256xf32>
    %99 = arith.addf %97, %98 : vector<16x256xf32>
    %cst_39 = arith.constant 5.000000e-01 : f32
    %100 = vector.broadcast %cst_39 : f32 to vector<16x256xf32>
    %101 = arith.mulf %100, %99 : vector<16x256xf32>
    %cst_40 = arith.constant 0.707106769 : f32
    %102 = vector.broadcast %cst_40 : f32 to vector<16x256xf32>
    %103 = arith.mulf %99, %102 : vector<16x256xf32>
    %104 = math.erf %103 : vector<16x256xf32>
    %cst_41 = arith.constant 1.000000e+00 : f32
    %105 = vector.broadcast %cst_41 : f32 to vector<16x256xf32>
    %106 = arith.addf %105, %104 : vector<16x256xf32>
    %107 = arith.mulf %101, %106 : vector<16x256xf32>
    %108 = arith.truncf %107 : vector<16x256xf32> to vector<16x256xbf16>
    %c0_42 = arith.constant 0 : index
    %c0_43 = arith.constant 0 : index
    %109 = vector.load %arg11[%c0_42, %c0_43] : memref<256x128xbf16, #tpu.memory_space<vmem>>, vector<256x128xbf16>
    %cst_44 = arith.constant dense<0.000000e+00> : vector<16x128xf32>
    %110 = tpu.matmul %108, %109, %cst_44 {dimension_numbers = #tpu.dot_dimension_numbers<[1], [0], [0], [1], [0, 0, 1, 1], [], []>} : vector<16x256xbf16>, vector<256x128xbf16>, vector<16x128xf32> -> vector<16x128xf32>
    %111 = vector.broadcast %6 : vector<1x128xf32> to vector<16x128xf32>
    %112 = arith.addf %110, %111 : vector<16x128xf32>
    %113 = arith.addf %72, %112 : vector<16x128xf32>
    %114 = vector.shape_cast %113 : vector<16x128xf32> to vector<2x8x128xf32>
    %c0_45 = arith.constant 0 : index
    %c0_46 = arith.constant 0 : index
    %c0_47 = arith.constant 0 : index
    %115 = vector.load %arg13[%c0_45, %c0_46, %c0_47] : memref<2x8x128xf32, #tpu.memory_space<vmem>>, vector<2x8x128xf32>
    tpu.vector_store %arg13[%c0_45, %c0_46, %c0_47], %114 {strides = array<i32>} : memref<2x8x128xf32, #tpu.memory_space<vmem>>, vector<2x8x128xf32>,
    return
  }
  func.func @transform_0(%arg0: i32) -> (i32, i32, i32) {
    %c0_i32 = arith.constant 0 : i32
    %c0_i32_0 = arith.constant 0 : i32
    %c0_i32_1 = arith.constant 0 : i32
    return %arg0, %c0_i32, %c0_i32_0 : i32, i32, i32
  }
  func.func @transform_1(%arg0: i32) -> (i32, i32) {
    %c0_i32 = arith.constant 0 : i32
    %c0_i32_0 = arith.constant 0 : i32
    %c0_i32_1 = arith.constant 0 : i32
    return %c0_i32, %c0_i32_0 : i32, i32
  }
  func.func @transform_2(%arg0: i32) -> (i32, i32) {
    %c0_i32 = arith.constant 0 : i32
    %c0_i32_0 = arith.constant 0 : i32
    %c0_i32_1 = arith.constant 0 : i32
    return %c0_i32, %c0_i32_0 : i32, i32
  }
  func.func @transform_3(%arg0: i32) -> (i32, i32) {
    %c0_i32 = arith.constant 0 : i32
    %c0_i32_0 = arith.constant 0 : i32
    %c0_i32_1 = arith.constant 0 : i32
    return %c0_i32, %c0_i32_0 : i32, i32
  }
  func.func @transform_4(%arg0: i32) -> (i32, i32) {
    %c0_i32 = arith.constant 0 : i32
    %c0_i32_0 = arith.constant 0 : i32
    %c0_i32_1 = arith.constant 0 : i32
    return %c0_i32, %c0_i32_0 : i32, i32
  }
  func.func @transform_5(%arg0: i32) -> (i32, i32) {
    %c0_i32 = arith.constant 0 : i32
    %c0_i32_0 = arith.constant 0 : i32
    %c0_i32_1 = arith.constant 0 : i32
    return %c0_i32, %c0_i32_0 : i32, i32
  }
  func.func @transform_6(%arg0: i32) -> (i32, i32) {
    %c0_i32 = arith.constant 0 : i32
    %c0_i32_0 = arith.constant 0 : i32
    %c0_i32_1 = arith.constant 0 : i32
    return %c0_i32, %c0_i32_0 : i32, i32
  }
  func.func @transform_7(%arg0: i32) -> (i32, i32) {
    %c0_i32 = arith.constant 0 : i32
    %c0_i32_0 = arith.constant 0 : i32
    %c0_i32_1 = arith.constant 0 : i32
    return %c0_i32, %c0_i32_0 : i32, i32
  }
  func.func @transform_8(%arg0: i32) -> (i32, i32) {
    %c0_i32 = arith.constant 0 : i32
    %c0_i32_0 = arith.constant 0 : i32
    %c0_i32_1 = arith.constant 0 : i32
    return %c0_i32, %c0_i32_0 : i32, i32
  }
  func.func @transform_9(%arg0: i32) -> (i32, i32) {
    %c0_i32 = arith.constant 0 : i32
    %c0_i32_0 = arith.constant 0 : i32
    %c0_i32_1 = arith.constant 0 : i32
    return %c0_i32, %c0_i32_0 : i32, i32
  }
  func.func @transform_10(%arg0: i32) -> (i32, i32) {
    %c0_i32 = arith.constant 0 : i32
    %c0_i32_0 = arith.constant 0 : i32
    %c0_i32_1 = arith.constant 0 : i32
    return %c0_i32, %c0_i32_0 : i32, i32
  }
  func.func @transform_11(%arg0: i32) -> (i32, i32) {
    %c0_i32 = arith.constant 0 : i32
    %c0_i32_0 = arith.constant 0 : i32
    %c0_i32_1 = arith.constant 0 : i32
    return %c0_i32, %c0_i32_0 : i32, i32
  }
  func.func @transform_12(%arg0: i32) -> (i32, i32, i32) {
    %c0_i32 = arith.constant 0 : i32
    %c0_i32_0 = arith.constant 0 : i32
    %c0_i32_1 = arith.constant 0 : i32
    return %arg0, %c0_i32, %c0_i32_0 : i32, i32, i32
  }
}

</mosaic_0001>

<llo_original>
// kernel: tpu_custom_call.1
$region0: #{tpu_custom_call.1}
  #allocation0 [shape = 'u32[]', space=smem, size = 0x4, offset = 0x4, fixed_abs, tag = 'smem constant byte address 0x4 - core index']
  #allocation1 [shape = 'u32[144,128]{1,0:T(1,128)}', space=vmem, size = 0x12000, scoped, tag = 'internal scratch']
  %s0 = inlined_call_operand.hbm [shape: f32[2,8,128], index: 0, kind: input, shape index: {}]
  %s1 = inlined_call_operand.vmem [shape: f32[1,128], index: 1, kind: input, shape index: {}]
  %s2 = inlined_call_operand.vmem [shape: f32[1,128], index: 2, kind: input, shape index: {}]
  %s3 = inlined_call_operand.hbm [shape: bf16[128,384], index: 3, kind: input, shape index: {}]
  %s4 = inlined_call_operand.hbm [shape: bf16[128,128], index: 4, kind: input, shape index: {}]
  %s5 = inlined_call_operand.vmem [shape: f32[1,128], index: 5, kind: input, shape index: {}]
  %s6 = inlined_call_operand.vmem [shape: f32[1,128], index: 6, kind: input, shape index: {}]
  %s7 = inlined_call_operand.vmem [shape: f32[1,128], index: 7, kind: input, shape index: {}]
  %s8 = inlined_call_operand.hbm [shape: bf16[128,256], index: 8, kind: input, shape index: {}]
  %s9 = inlined_call_operand.vmem [shape: f32[1,256], index: 9, kind: input, shape index: {}]
  %s10 = inlined_call_operand.hbm [shape: bf16[256,128], index: 10, kind: input, shape index: {}]
  %s11 = inlined_call_operand.vmem [shape: f32[1,128], index: 11, kind: input, shape index: {}]
  %s12 = inlined_call_operand.hbm [shape: f32[2,8,128], index: 12, kind: output, shape index: {}]
  %s13 = sld [smem:[#allocation0]]
  $region78: #{tpu_custom_call.1} parent=0
    _
  %s15 = ssub.s32 1, %s13
  %s16 = scalar_select 0, %s15, %s13
  $region1: #{tpu_custom_call.1} parent=0
    #allocation2 [shape = 'u8[8192]{0}', space=vmem, size = 0x2000, scoped, tag = 'input window, operand 0, single buffered']
    #allocation3 [shape = 's32[1]{0}', space=sflag, size = 0x4, scoped, tag = 'scoped memory for tpu_custom_call.1']
    #allocation4 [shape = 's32[1]{0}', space=sflag, size = 0x4, scoped, tag = 'scoped memory for tpu_custom_call.1']
    #allocation5 [shape = 'u8[98304]{0}', space=vmem, size = 0x18000, scoped, tag = 'input window, operand 3, single buffered']
    #allocation6 [shape = 's32[1]{0}', space=sflag, size = 0x4, scoped, tag = 'scoped memory for tpu_custom_call.1']
    #allocation7 [shape = 'u8[32768]{0}', space=vmem, size = 0x8000, scoped, tag = 'input window, operand 4, single buffered']
    #allocation8 [shape = 'u8[65536]{0}', space=vmem, size = 0x10000, scoped, tag = 'input window, operand 8, single buffered']
    #allocation9 [shape = 's32[1]{0}', space=sflag, size = 0x4, scoped, tag = 'scoped memory for tpu_custom_call.1']
    #allocation10 [shape = 'u8[65536]{0}', space=vmem, size = 0x10000, scoped, tag = 'input window, operand 10, single buffered']
    #allocation11 [shape = 'u8[8192]{0}', space=vmem, size = 0x2000, scoped, tag = 'output window, operand 0, single buffered']
    %17 = vsyncpa [#allocation3], 0
    %18 = vsyncpa [#allocation6], 0
    %19 = vsyncpa [#allocation9], 0
    %20 = vsyncpa [#allocation4], 0
    // Predicated region
    $region2: #{tpu_custom_call.1} parent=1 // pred_check
      _
    $region3: #{tpu_custom_call.1} parent=1 // pred_check_branch
      %22 = sbr.rel (0) target = $region5
    $region4: #{tpu_custom_call.1} parent=1 // pred_region
      %s24 = ssub.s32 256, 256
      %25 = vsyncadd [#allocation3], %s24
      %s26 = sshll.u32 [#allocation2], 4
      %s27 = int_to_ptr.vmem [resolvable:$true] %s26
      %32 = dma.hbm_to_vmem [thread:$0]  %s0, 256, %s27, [#allocation3], 128, 128, 8
    $region5: #{tpu_custom_call.1} parent=1 // pred_fallthru
      _
    // Predicated region
    $region6: #{tpu_custom_call.1} parent=1 // pred_check
      _
    $region7: #{tpu_custom_call.1} parent=1 // pred_check_branch
      %34 = sbr.rel (0) target = $region9
    $region8: #{tpu_custom_call.1} parent=1 // pred_region
      _
    $region9: #{tpu_custom_call.1} parent=1 // pred_fallthru
      _
    // Predicated region
    $region10: #{tpu_custom_call.1} parent=1 // pred_check
      _
    $region11: #{tpu_custom_call.1} parent=1 // pred_check_branch
      %36 = sbr.rel (0) target = $region13
    $region12: #{tpu_custom_call.1} parent=1 // pred_region
      _
    $region13: #{tpu_custom_call.1} parent=1 // pred_fallthru
      _
    // Predicated region
    $region14: #{tpu_custom_call.1} parent=1 // pred_check
      _
    $region15: #{tpu_custom_call.1} parent=1 // pred_check_branch
      %38 = sbr.rel (0) target = $region17
    $region16: #{tpu_custom_call.1} parent=1 // pred_region
      %s40 = ssub.s32 3072, 3072
      %41 = vsyncadd [#allocation6], %s40
      %s42 = sshll.u32 [#allocation5], 4
      %s43 = int_to_ptr.vmem [resolvable:$true] %s42
      %48 = dma.hbm_to_vmem [thread:$0]  %s3, 3072, %s43, [#allocation6], 192, 192, 12
    $region17: #{tpu_custom_call.1} parent=1 // pred_fallthru
      _
    // Predicated region
    $region18: #{tpu_custom_call.1} parent=1 // pred_check
      _
    $region19: #{tpu_custom_call.1} parent=1 // pred_check_branch
      %50 = sbr.rel (0) target = $region21
    $region20: #{tpu_custom_call.1} parent=1 // pred_region
      %s52 = ssub.s32 1024, 1024
      %53 = vsyncadd [#allocation6], %s52
      %s54 = sshll.u32 [#allocation7], 4
      %s55 = int_to_ptr.vmem [resolvable:$true] %s54
      %60 = dma.hbm_to_vmem [thread:$0]  %s4, 1024, %s55, [#allocation6], 64, 64, 4
    $region21: #{tpu_custom_call.1} parent=1 // pred_fallthru
      _
    // Predicated region
    $region22: #{tpu_custom_call.1} parent=1 // pred_check
      _
    $region23: #{tpu_custom_call.1} parent=1 // pred_check_branch
      %62 = sbr.rel (0) target = $region25
    $region24: #{tpu_custom_call.1} parent=1 // pred_region
      _
    $region25: #{tpu_custom_call.1} parent=1 // pred_fallthru
      _
    // Predicated region
    $region26: #{tpu_custom_call.1} parent=1 // pred_check
      _
    $region27: #{tpu_custom_call.1} parent=1 // pred_check_branch
      %64 = sbr.rel (0) target = $region29
    $region28: #{tpu_custom_call.1} parent=1 // pred_region
      _
    $region29: #{tpu_custom_call.1} parent=1 // pred_fallthru
      _
    // Predicated region
    $region30: #{tpu_custom_call.1} parent=1 // pred_check
      _
    $region31: #{tpu_custom_call.1} parent=1 // pred_check_branch
      %66 = sbr.rel (0) target = $region33
    $region32: #{tpu_custom_call.1} parent=1 // pred_region
      _
    $region33: #{tpu_custom_call.1} parent=1 // pred_fallthru
      _
    // Predicated region
    $region34: #{tpu_custom_call.1} parent=1 // pred_check
      _
    $region35: #{tpu_custom_call.1} parent=1 // pred_check_branch
      %68 = sbr.rel (0) target = $region37
    $region36: #{tpu_custom_call.1} parent=1 // pred_region
      %s70 = ssub.s32 2048, 2048
      %71 = vsyncadd [#allocation9], %s70
      %s72 = sshll.u32 [#allocation8], 4
      %s73 = int_to_ptr.vmem [resolvable:$true] %s72
      %78 = dma.hbm_to_vmem [thread:$0]  %s8, 2048, %s73, [#allocation9], 128, 128, 8
    $region37: #{tpu_custom_call.1} parent=1 // pred_fallthru
      _
    // Predicated region
    $region38: #{tpu_custom_call.1} parent=1 // pred_check
      _
    $region39: #{tpu_custom_call.1} parent=1 // pred_check_branch
      %80 = sbr.rel (0) target = $region41
    $region40: #{tpu_custom_call.1} parent=1 // pred_region
      _
    $region41: #{tpu_custom_call.1} parent=1 // pred_fallthru
      _
    // Predicated region
    $region42: #{tpu_custom_call.1} parent=1 // pred_check
      _
    $region43: #{tpu_custom_call.1} parent=1 // pred_check_branch
      %82 = sbr.rel (0) target = $region45
    $region44: #{tpu_custom_call.1} parent=1 // pred_region
      %s84 = ssub.s32 2048, 2048
      %85 = vsyncadd [#allocation9], %s84
      %s86 = sshll.u32 [#allocation10], 4
      %s87 = int_to_ptr.vmem [resolvable:$true] %s86
      %92 = dma.hbm_to_vmem [thread:$0]  %s10, 2048, %s87, [#allocation9], 64, 64, 4
    $region45: #{tpu_custom_call.1} parent=1 // pred_fallthru
      _
    // Predicated region
    $region46: #{tpu_custom_call.1} parent=1 // pred_check
      _
    $region47: #{tpu_custom_call.1} parent=1 // pred_check_branch
      %94 = sbr.rel (0) target = $region49
    $region48: #{tpu_custom_call.1} parent=1 // pred_region
      _
    $region49: #{tpu_custom_call.1} parent=1 // pred_fallthru
      _
    // Predicated region
    $region50: #{tpu_custom_call.1} parent=1 // pred_check
      _
    $region51: #{tpu_custom_call.1} parent=1 // pred_check_branch
      %96 = sbr.rel (0) target = $region53
    $region52: #{tpu_custom_call.1} parent=1 // pred_region
      %97 = dma.done [#allocation3], 256
    $region53: #{tpu_custom_call.1} parent=1 // pred_fallthru
      _
    // Predicated region
    $region54: #{tpu_custom_call.1} parent=1 // pred_check
      _
    $region55: #{tpu_custom_call.1} parent=1 // pred_check_branch
      %99 = sbr.rel (0) target = $region57
    $region56: #{tpu_custom_call.1} parent=1 // pred_region
      %100 = dma.done [#allocation6], 3072
    $region57: #{tpu_custom_call.1} parent=1 // pred_fallthru
      _
    // Predicated region
    $region58: #{tpu_custom_call.1} parent=1 // pred_check
      _
    $region59: #{tpu_custom_call.1} parent=1 // pred_check_branch
      %102 = sbr.rel (0) target = $region61
    $region60: #{tpu_custom_call.1} parent=1 // pred_region
      %103 = dma.done [#allocation6], 1024
    $region61: #{tpu_custom_call.1} parent=1 // pred_fallthru
      _
    // Predicated region
    $region62: #{tpu_custom_call.1} parent=1 // pred_check
      _
    $region63: #{tpu_custom_call.1} parent=1 // pred_check_branch
      %105 = sbr.rel (0) target = $region65
    $region64: #{tpu_custom_call.1} parent=1 // pred_region
      %106 = dma.done [#allocation9], 2048
    $region65: #{tpu_custom_call.1} parent=1 // pred_fallthru
      _
    // Predicated region
    $region66: #{tpu_custom_call.1} parent=1 // pred_check
      _
    $region67: #{tpu_custom_call.1} parent=1 // pred_check_branch
      %108 = sbr.rel (0) target = $region69
    $region68: #{tpu_custom_call.1} parent=1 // pred_region
      %109 = dma.done [#allocation9], 2048
    $region69: #{tpu_custom_call.1} parent=1 // pred_fallthru
      _
    %v111 = vld [vmem:[%s1] sm:$0x1]
    %v112 = vld [vmem:[%s2] sm:$0x1]
    %v113 = vld [vmem:[%s6] sm:$0x1]
    %v114 = vld [vmem:[%s7] sm:$0x1]
    %v115 = vld [vmem:[%s5] sm:$0x1]
    %v116 = vld [vmem:[%s9] sm:$0x3]
    %v117 = vld [vmem:[%s11] sm:$0x1]
    %v118 = vld [vmem:[#allocation2] sm:$0xff]
    %v119 = vld [vmem:[#allocation2 + $0x8] sm:$0xff]
    %120 = vadd.xlane.f32.xlu0 %v118
    %v121 = vpop.xlane.xlu0 %120
    %122 = vadd.xlane.f32.xlu0 %v119
    %v123 = vpop.xlane.xlu0 %122
    %v124 = vrcp.pop 128.0
    %v125 = vmul.f32 %v121, %v124
    %v126 = vmul.f32 %v123, %v124
    %v127 = vsub.f32 %v118, %v125
    %v128 = vsub.f32 %v119, %v126
    %v129 = vmul.f32 %v127, %v127
    %v130 = vmul.f32 %v128, %v128
    %131 = vadd.xlane.f32.xlu0 %v129
    %v132 = vpop.xlane.xlu0 %131
    %133 = vadd.xlane.f32.xlu0 %v130
    %v134 = vpop.xlane.xlu0 %133
    %v135 = vmul.f32 %v132, %v124
    %v136 = vmul.f32 %v134, %v124
    %v137 = vadd.f32 %v135, 1e-05
    %v138 = vadd.f32 %v136, 1e-05
    %v139 = vrsqrt.pop %v137
    %v140 = vrsqrt.pop %v138
    %v141 = vmul.f32 %v127, %v139
    %v142 = vmul.f32 %v128, %v140
    %v144 = vlaneseq
    %v145 = vshrl.u32 %v144, 7
    %v146 = vsub.s32 0, %v145
    %v147 = vrot.slane %v111, %v146
    %v149 = vmul.f32 %v141, %v147
    %v150 = vmul.f32 %v142, %v147
    %v152 = vlaneseq
    %v153 = vshrl.u32 %v152, 7
    %v154 = vsub.s32 0, %v153
    %v155 = vrot.slane %v112, %v154
    %v157 = vadd.f32 %v149, %v155
    %v158 = vadd.f32 %v150, %v155
    %v159 = vpack.c.bf16 %v158, %v157
    %v160 = vld [vmem:[#allocation5] sm:$0xff]
    %v161 = vld [vmem:[#allocation5 + $0x8] sm:$0xf]
    %v162 = vld [vmem:[#allocation5 + $0xc] sm:$0xff]
    %v163 = vld [vmem:[#allocation5 + $0x14] sm:$0xf]
    %v164 = vld [vmem:[#allocation5 + $0x18] sm:$0xff]
    %v165 = vld [vmem:[#allocation5 + $0x20] sm:$0xf]
    %v166 = vld [vmem:[#allocation5 + $0x24] sm:$0xff]
    %v167 = vld [vmem:[#allocation5 + $0x2c] sm:$0xf]
    %v168 = vld [vmem:[#allocation5 + $0x30] sm:$0xff]
    %v169 = vld [vmem:[#allocation5 + $0x38] sm:$0xf]
    %v170 = vld [vmem:[#allocation5 + $0x3c] sm:$0xff]
    %v171 = vld [vmem:[#allocation5 + $0x44] sm:$0xf]
    %v172 = vld [vmem:[#allocation5 + $0x48] sm:$0xff]
    %v173 = vld [vmem:[#allocation5 + $0x50] sm:$0xf]
    %v174 = vld [vmem:[#allocation5 + $0x54] sm:$0xff]
    %v175 = vld [vmem:[#allocation5 + $0x5c] sm:$0xf]
    %v176 = vld [vmem:[#allocation5 + $0x60] sm:$0xff]
    %v177 = vld [vmem:[#allocation5 + $0x68] sm:$0xf]
    %v178 = vld [vmem:[#allocation5 + $0x6c] sm:$0xff]
    %v179 = vld [vmem:[#allocation5 + $0x74] sm:$0xf]
    %v180 = vld [vmem:[#allocation5 + $0x78] sm:$0xff]
    %v181 = vld [vmem:[#allocation5 + $0x80] sm:$0xf]
    %v182 = vld [vmem:[#allocation5 + $0x84] sm:$0xff]
    %v183 = vld [vmem:[#allocation5 + $0x8c] sm:$0xf]
    %v184 = vld [vmem:[#allocation5 + $0x90] sm:$0xff]
    %v185 = vld [vmem:[#allocation5 + $0x98] sm:$0xf]
    %v186 = vld [vmem:[#allocation5 + $0x9c] sm:$0xff]
    %v187 = vld [vmem:[#allocation5 + $0xa4] sm:$0xf]
    %v188 = vld [vmem:[#allocation5 + $0xa8] sm:$0xff]
    %v189 = vld [vmem:[#allocation5 + $0xb0] sm:$0xf]
    %v190 = vld [vmem:[#allocation5 + $0xb4] sm:$0xff]
    %v191 = vld [vmem:[#allocation5 + $0xbc] sm:$0xf]
    %v224 = vunpack.c.l.b16 %v160
    %v225 = vunpack.c.h.b16 %v160
    %v226 = vunpack.c.l.b16 %v161
    %v227 = vunpack.c.l.b16 %v162
    %v228 = vunpack.c.h.b16 %v162
    %v229 = vunpack.c.l.b16 %v163
    %v230 = vunpack.c.l.b16 %v164
    %v231 = vunpack.c.h.b16 %v164
    %v232 = vunpack.c.l.b16 %v165
    %v233 = vunpack.c.l.b16 %v166
    %v234 = vunpack.c.h.b16 %v166
    %v235 = vunpack.c.l.b16 %v167
    %v236 = vunpack.c.l.b16 %v168
    %v237 = vunpack.c.h.b16 %v168
    %v238 = vunpack.c.l.b16 %v169
    %v239 = vunpack.c.l.b16 %v170
    %v240 = vunpack.c.h.b16 %v170
    %v241 = vunpack.c.l.b16 %v171
    %v242 = vunpack.c.l.b16 %v172
    %v243 = vunpack.c.h.b16 %v172
    %v244 = vunpack.c.l.b16 %v173
    %v245 = vunpack.c.l.b16 %v174
    %v246 = vunpack.c.h.b16 %v174
    %v247 = vunpack.c.l.b16 %v175
    %v248 = vunpack.c.l.b16 %v176
    %v249 = vunpack.c.h.b16 %v176
    %v250 = vunpack.c.l.b16 %v177
    %v251 = vunpack.c.l.b16 %v178
    %v252 = vunpack.c.h.b16 %v178
    %v253 = vunpack.c.l.b16 %v179
    %v254 = vunpack.c.l.b16 %v180
    %v255 = vunpack.c.h.b16 %v180
    %v256 = vunpack.c.l.b16 %v181
    %v257 = vunpack.c.l.b16 %v182
    %v258 = vunpack.c.h.b16 %v182
    %v259 = vunpack.c.l.b16 %v183
    %v260 = vunpack.c.l.b16 %v184
    %v261 = vunpack.c.h.b16 %v184
    %v262 = vunpack.c.l.b16 %v185
    %v263 = vunpack.c.l.b16 %v186
    %v264 = vunpack.c.h.b16 %v186
    %v265 = vunpack.c.l.b16 %v187
    %v266 = vunpack.c.l.b16 %v188
    %v267 = vunpack.c.h.b16 %v188
    %v268 = vunpack.c.l.b16 %v189
    %v269 = vunpack.c.l.b16 %v190
    %v270 = vunpack.c.h.b16 %v190
    %v271 = vunpack.c.l.b16 %v191
    %v272 = vpack.c.b16 %v227, %v224
    %v273 = vpack.c.b16 %v228, %v225
    %v274 = vpack.c.b16 %v229, %v226
    %v275 = vpack.c.b16 %v233, %v230
    %v276 = vpack.c.b16 %v234, %v231
    %v277 = vpack.c.b16 %v235, %v232
    %v278 = vpack.c.b16 %v239, %v236
    %v279 = vpack.c.b16 %v240, %v237
    %v280 = vpack.c.b16 %v241, %v238
    %v281 = vpack.c.b16 %v245, %v242
    %v282 = vpack.c.b16 %v246, %v243
    %v283 = vpack.c.b16 %v247, %v244
    %v284 = vpack.c.b16 %v251, %v248
    %v285 = vpack.c.b16 %v252, %v249
    %v286 = vpack.c.b16 %v253, %v250
    %v287 = vpack.c.b16 %v257, %v254
    %v288 = vpack.c.b16 %v258, %v255
    %v289 = vpack.c.b16 %v259, %v256
    %v290 = vpack.c.b16 %v263, %v260
    %v291 = vpack.c.b16 %v264, %v261
    %v292 = vpack.c.b16 %v265, %v262
    %v293 = vpack.c.b16 %v269, %v266
    %v294 = vpack.c.b16 %v270, %v267
    %v295 = vpack.c.b16 %v271, %v268
    %320 = vmatprep.subr.bf16.mxu0 %v273
    %321 = vmatpush1.bf16.msra.mxu0 %v272
    %322 = vmatprep.subr.bf16.mxu0 %v276
    %323 = vmatpush1.bf16.msra.mxu0 %v275
    %324 = vmatprep.subr.bf16.mxu0 %v279
    %325 = vmatpush1.bf16.msra.mxu0 %v278
    %326 = vmatprep.subr.bf16.mxu0 %v282
    %327 = vmatpush1.bf16.msra.mxu0 %v281
    %328 = vmatprep.subr.bf16.mxu0 %v285
    %329 = vmatpush1.bf16.msra.mxu0 %v284
    %330 = vmatprep.subr.bf16.mxu0 %v288
    %331 = vmatpush1.bf16.msra.mxu0 %v287
    %332 = vmatprep.subr.bf16.mxu0 %v291
    %333 = vmatpush1.bf16.msra.mxu0 %v290
    %334 = vmatprep.subr.bf16.mxu0 %v294
    %335 = vmatpush1.bf16.msra.mxu0 %v293
    %336 = vmatprep.subr.bf16.mxu0 0
    %337 = vmatpush1.bf16.msra.mxu0 0
    %338 = vmatprep.subr.bf16.mxu0 0
    %339 = vmatpush1.bf16.msra.mxu0 0
    %340 = vmatprep.subr.bf16.mxu0 0
    %341 = vmatpush1.bf16.msra.mxu0 0
    %342 = vmatprep.subr.bf16.mxu0 0
    %343 = vmatpush1.bf16.msra.mxu0 0
    %344 = vmatprep.subr.bf16.mxu0 0
    %345 = vmatpush1.bf16.msra.mxu0 0
    %346 = vmatprep.subr.bf16.mxu0 0
    %347 = vmatpush1.bf16.msra.mxu0 0
    %348 = vmatprep.subr.bf16.mxu0 0
    %349 = vmatpush1.bf16.msra.mxu0 0
    %350 = vmatprep.subr.bf16.mxu0 0
    %351 = vmatpush1.bf16.msra.mxu0 0
    %352 = vmatprep.mubr.bf16.mxu0 0
    %353 = vmatmul.mubr.bf16.gmra.mrb[0].mxu0 %v159
    %v354 = vpop.f32.mrb[0].mxu0
    %v355 = vadd.f32 0.0, %v354
    %v356 = vpop.f32.mrb[0].mxu0
    %v357 = vadd.f32 0.0, %v356
    %v358 = vpop.f32.mrb[0].mxu0
    %v359 = vadd.f32 0.0, %v358
    %v360 = vpop.f32.mrb[0].mxu0
    %v361 = vadd.f32 0.0, %v360
    %362 = vdwg.mxu0
    %363 = vmatprep.subr.bf16.mxu0 0
    %364 = vmatpush1.bf16.msra.mxu0 %v274
    %365 = vmatprep.subr.bf16.mxu0 0
    %366 = vmatpush1.bf16.msra.mxu0 %v277
    %367 = vmatprep.subr.bf16.mxu0 0
    %368 = vmatpush1.bf16.msra.mxu0 %v280
    %369 = vmatprep.subr.bf16.mxu0 0
    %370 = vmatpush1.bf16.msra.mxu0 %v283
    %371 = vmatprep.subr.bf16.mxu0 0
    %372 = vmatpush1.bf16.msra.mxu0 %v286
    %373 = vmatprep.subr.bf16.mxu0 0
    %374 = vmatpush1.bf16.msra.mxu0 %v289
    %375 = vmatprep.subr.bf16.mxu0 0
    %376 = vmatpush1.bf16.msra.mxu0 %v292
    %377 = vmatprep.subr.bf16.mxu0 0
    %378 = vmatpush1.bf16.msra.mxu0 %v295
    %379 = vmatprep.subr.bf16.mxu0 0
    %380 = vmatpush1.bf16.msra.mxu0 0
    %381 = vmatprep.subr.bf16.mxu0 0
    %382 = vmatpush1.bf16.msra.mxu0 0
    %383 = vmatprep.subr.bf16.mxu0 0
    %384 = vmatpush1.bf16.msra.mxu0 0
    %385 = vmatprep.subr.bf16.mxu0 0
    %386 = vmatpush1.bf16.msra.mxu0 0
    %387 = vmatprep.subr.bf16.mxu0 0
    %388 = vmatpush1.bf16.msra.mxu0 0
    %389 = vmatprep.subr.bf16.mxu0 0
    %390 = vmatpush1.bf16.msra.mxu0 0
    %391 = vmatprep.subr.bf16.mxu0 0
    %392 = vmatpush1.bf16.msra.mxu0 0
    %393 = vmatprep.subr.bf16.mxu0 0
    %394 = vmatpush1.bf16.msra.mxu0 0
    %395 = vmatprep.mubr.bf16.mxu0 0
    %396 = vmatmul.mubr.bf16.gmra.mrb[0].mxu0 %v159
    %v397 = vpop.f32.mrb[0].mxu0
    %v398 = vadd.f32 0.0, %v397
    %v399 = vpop.f32.mrb[0].mxu0
    %v400 = vpop.f32.mrb[0].mxu0
    %v401 = vadd.f32 0.0, %v400
    %v402 = vpop.f32.mrb[0].mxu0
    %403 = vdwg.mxu0
    %406 = vrot.lane.b32.xlu0 %v355, 96
    %v407 = vpop.permute.xlu0 %406
    %408 = vrot.lane.b32.xlu0 %v359, 96
    %v409 = vpop.permute.xlu0 %408
    %412 = vrot.lane.b32.xlu0 %v355, 64
    %v413 = vpop.permute.xlu0 %412
    %414 = vrot.lane.b32.xlu0 %v359, 64
    %v415 = vpop.permute.xlu0 %414
    %418 = vrot.lane.b32.xlu0 %v355, 32
    %v419 = vpop.permute.xlu0 %418
    %420 = vrot.lane.b32.xlu0 %v359, 32
    %v421 = vpop.permute.xlu0 %420
    %v424 = vcombine.low %v355, %v413
    %v425 = vcombine.high %v355, %v413
    %v427 = vunpack.c.l.s4 1983009808
    %v428 = vunpack.c.0.s8 %v427
    %v429 = vlaneseq
    %v430 = vshrl.u32 %v429, 7
    %v431 = vsub.s32 %v428, %v430
    %v432 = vrot.slane %v424, %v431
    %v434 = vunpack.c.l.s4 1983009808
    %v435 = vunpack.c.0.s8 %v434
    %v436 = vlaneseq
    %v437 = vshrl.u32 %v436, 7
    %v438 = vsub.s32 %v435, %v437
    %v439 = vrot.slane %v425, %v438
    %v440 = vcombine.low %v407, %v419
    %v441 = vcombine.high %v407, %v419
    %v443 = vunpack.c.l.s4 1983009808
    %v444 = vunpack.c.0.s8 %v443
    %v445 = vlaneseq
    %v446 = vshrl.u32 %v445, 7
    %v447 = vsub.s32 %v444, %v446
    %v448 = vrot.slane %v440, %v447
    %v450 = vunpack.c.l.s4 1983009808
    %v451 = vunpack.c.0.s8 %v450
    %v452 = vlaneseq
    %v453 = vshrl.u32 %v452, 7
    %v454 = vsub.s32 %v451, %v453
    %v455 = vrot.slane %v441, %v454
    %v456 = vcombine.low %v432, %v448
    %v457 = vcombine.high %v432, %v448
    %v459 = vunpack.c.l.s4 1934713408
    %v460 = vunpack.c.0.s8 %v459
    %v461 = vlaneseq
    %v462 = vshrl.u32 %v461, 7
    %v463 = vsub.s32 %v460, %v462
    %v464 = vrot.slane %v456, %v463
    %v466 = vunpack.c.l.s4 1934713408
    %v467 = vunpack.c.0.s8 %v466
    %v468 = vlaneseq
    %v469 = vshrl.u32 %v468, 7
    %v470 = vsub.s32 %v467, %v469
    %v471 = vrot.slane %v457, %v470
    %v472 = vcombine.low %v439, %v455
    %v473 = vcombine.high %v439, %v455
    %v475 = vunpack.c.l.s4 1934713408
    %v476 = vunpack.c.0.s8 %v475
    %v477 = vlaneseq
    %v478 = vshrl.u32 %v477, 7
    %v479 = vsub.s32 %v476, %v478
    %v480 = vrot.slane %v472, %v479
    %v482 = vunpack.c.l.s4 1934713408
    %v483 = vunpack.c.0.s8 %v482
    %v484 = vlaneseq
    %v485 = vshrl.u32 %v484, 7
    %v486 = vsub.s32 %v483, %v485
    %v487 = vrot.slane %v473, %v486
    %v488 = vcombine.high %v464, 0.0
    %v489 = vcombine.high %v471, 0.0
    %v490 = vcombine.high %v480, 0.0
    %v491 = vcombine.high %v487, 0.0
    %v492 = vcombine.low %v359, %v415
    %v493 = vcombine.high %v359, %v415
    %v495 = vunpack.c.l.s4 1983009808
    %v496 = vunpack.c.0.s8 %v495
    %v497 = vlaneseq
    %v498 = vshrl.u32 %v497, 7
    %v499 = vsub.s32 %v496, %v498
    %v500 = vrot.slane %v492, %v499
    %v502 = vunpack.c.l.s4 1983009808
    %v503 = vunpack.c.0.s8 %v502
    %v504 = vlaneseq
    %v505 = vshrl.u32 %v504, 7
    %v506 = vsub.s32 %v503, %v505
    %v507 = vrot.slane %v493, %v506
    %v508 = vcombine.low %v409, %v421
    %v509 = vcombine.high %v409, %v421
    %v511 = vunpack.c.l.s4 1983009808
    %v512 = vunpack.c.0.s8 %v511
    %v513 = vlaneseq
    %v514 = vshrl.u32 %v513, 7
    %v515 = vsub.s32 %v512, %v514
    %v516 = vrot.slane %v508, %v515
    %v518 = vunpack.c.l.s4 1983009808
    %v519 = vunpack.c.0.s8 %v518
    %v520 = vlaneseq
    %v521 = vshrl.u32 %v520, 7
    %v522 = vsub.s32 %v519, %v521
    %v523 = vrot.slane %v509, %v522
    %v524 = vcombine.low %v500, %v516
    %v525 = vcombine.high %v500, %v516
    %v527 = vunpack.c.l.s4 1934713408
    %v528 = vunpack.c.0.s8 %v527
    %v529 = vlaneseq
    %v530 = vshrl.u32 %v529, 7
    %v531 = vsub.s32 %v528, %v530
    %v532 = vrot.slane %v524, %v531
    %v534 = vunpack.c.l.s4 1934713408
    %v535 = vunpack.c.0.s8 %v534
    %v536 = vlaneseq
    %v537 = vshrl.u32 %v536, 7
    %v538 = vsub.s32 %v535, %v537
    %v539 = vrot.slane %v525, %v538
    %v540 = vcombine.low %v507, %v523
    %v541 = vcombine.high %v507, %v523
    %v543 = vunpack.c.l.s4 1934713408
    %v544 = vunpack.c.0.s8 %v543
    %v545 = vlaneseq
    %v546 = vshrl.u32 %v545, 7
    %v547 = vsub.s32 %v544, %v546
    %v548 = vrot.slane %v540, %v547
    %v550 = vunpack.c.l.s4 1934713408
    %v551 = vunpack.c.0.s8 %v550
    %v552 = vlaneseq
    %v553 = vshrl.u32 %v552, 7
    %v554 = vsub.s32 %v551, %v553
    %v555 = vrot.slane %v541, %v554
    %v556 = vcombine.high %v532, 0.0
    %v557 = vcombine.high %v539, 0.0
    %v558 = vcombine.high %v548, 0.0
    %v559 = vcombine.high %v555, 0.0
    %v560 = vcombine.low %v464, %v471
    %v562 = vunpack.c.l.s4 1983009808
    %v563 = vunpack.c.0.s8 %v562
    %v564 = vlaneseq
    %v565 = vshrl.u32 %v564, 7
    %v566 = vsub.s32 %v563, %v565
    %v567 = vrot.slane %v560, %v566
    %v568 = vcombine.low %v488, %v489
    %v570 = vunpack.c.l.s4 1983009808
    %v571 = vunpack.c.0.s8 %v570
    %v572 = vlaneseq
    %v573 = vshrl.u32 %v572, 7
    %v574 = vsub.s32 %v571, %v573
    %v575 = vrot.slane %v568, %v574
    %v576 = vcombine.low %v480, %v487
    %v578 = vunpack.c.l.s4 1983009808
    %v579 = vunpack.c.0.s8 %v578
    %v580 = vlaneseq
    %v581 = vshrl.u32 %v580, 7
    %v582 = vsub.s32 %v579, %v581
    %v583 = vrot.slane %v576, %v582
    %v584 = vcombine.low %v490, %v491
    %v586 = vunpack.c.l.s4 1983009808
    %v587 = vunpack.c.0.s8 %v586
    %v588 = vlaneseq
    %v589 = vshrl.u32 %v588, 7
    %v590 = vsub.s32 %v587, %v589
    %v591 = vrot.slane %v584, %v590
    %v592 = vcombine.low %v567, %v575
    %v593 = vcombine.high %v567, %v575
    %v595 = vunpack.c.l.s4 1934713408
    %v596 = vunpack.c.0.s8 %v595
    %v597 = vlaneseq
    %v598 = vshrl.u32 %v597, 7
    %v599 = vsub.s32 %v596, %v598
    %v600 = vrot.slane %v592, %v599
    %v602 = vunpack.c.l.s4 1934713408
    %v603 = vunpack.c.0.s8 %v602
    %v604 = vlaneseq
    %v605 = vshrl.u32 %v604, 7
    %v606 = vsub.s32 %v603, %v605
    %v607 = vrot.slane %v593, %v606
    %v608 = vcombine.low %v583, %v591
    %v609 = vcombine.high %v583, %v591
    %v611 = vunpack.c.l.s4 1934713408
    %v612 = vunpack.c.0.s8 %v611
    %v613 = vlaneseq
    %v614 = vshrl.u32 %v613, 7
    %v615 = vsub.s32 %v612, %v614
    %v616 = vrot.slane %v608, %v615
    %v618 = vunpack.c.l.s4 1934713408
    %v619 = vunpack.c.0.s8 %v618
    %v620 = vlaneseq
    %v621 = vshrl.u32 %v620, 7
    %v622 = vsub.s32 %v619, %v621
    %v623 = vrot.slane %v609, %v622
    %v624 = vcombine.low %v600, %v616
    %v625 = vcombine.high %v600, %v616
    %v626 = vcombine.low %v607, %v623
    %v627 = vcombine.high %v607, %v623
    %v628 = vcombine.low %v532, %v539
    %v630 = vunpack.c.l.s4 1983009808
    %v631 = vunpack.c.0.s8 %v630
    %v632 = vlaneseq
    %v633 = vshrl.u32 %v632, 7
    %v634 = vsub.s32 %v631, %v633
    %v635 = vrot.slane %v628, %v634
    %v636 = vcombine.low %v556, %v557
    %v638 = vunpack.c.l.s4 1983009808
    %v639 = vunpack.c.0.s8 %v638
    %v640 = vlaneseq
    %v641 = vshrl.u32 %v640, 7
    %v642 = vsub.s32 %v639, %v641
    %v643 = vrot.slane %v636, %v642
    %v644 = vcombine.low %v548, %v555
    %v646 = vunpack.c.l.s4 1983009808
    %v647 = vunpack.c.0.s8 %v646
    %v648 = vlaneseq
    %v649 = vshrl.u32 %v648, 7
    %v650 = vsub.s32 %v647, %v649
    %v651 = vrot.slane %v644, %v650
    %v652 = vcombine.low %v558, %v559
    %v654 = vunpack.c.l.s4 1983009808
    %v655 = vunpack.c.0.s8 %v654
    %v656 = vlaneseq
    %v657 = vshrl.u32 %v656, 7
    %v658 = vsub.s32 %v655, %v657
    %v659 = vrot.slane %v652, %v658
    %v660 = vcombine.low %v635, %v643
    %v661 = vcombine.high %v635, %v643
    %v663 = vunpack.c.l.s4 1934713408
    %v664 = vunpack.c.0.s8 %v663
    %v665 = vlaneseq
    %v666 = vshrl.u32 %v665, 7
    %v667 = vsub.s32 %v664, %v666
    %v668 = vrot.slane %v660, %v667
    %v670 = vunpack.c.l.s4 1934713408
    %v671 = vunpack.c.0.s8 %v670
    %v672 = vlaneseq
    %v673 = vshrl.u32 %v672, 7
    %v674 = vsub.s32 %v671, %v673
    %v675 = vrot.slane %v661, %v674
    %v676 = vcombine.low %v651, %v659
    %v677 = vcombine.high %v651, %v659
    %v679 = vunpack.c.l.s4 1934713408
    %v680 = vunpack.c.0.s8 %v679
    %v681 = vlaneseq
    %v682 = vshrl.u32 %v681, 7
    %v683 = vsub.s32 %v680, %v682
    %v684 = vrot.slane %v676, %v683
    %v686 = vunpack.c.l.s4 1934713408
    %v687 = vunpack.c.0.s8 %v686
    %v688 = vlaneseq
    %v689 = vshrl.u32 %v688, 7
    %v690 = vsub.s32 %v687, %v689
    %v691 = vrot.slane %v677, %v690
    %v692 = vcombine.low %v668, %v684
    %v693 = vcombine.high %v668, %v684
    %v694 = vcombine.low %v675, %v691
    %v695 = vcombine.high %v675, %v691
    %v696 = vpack.c.bf16 %v624, %v624
    %v697 = vpack.c.bf16 %v625, %v625
    %v698 = vpack.c.bf16 %v626, %v626
    %v699 = vpack.c.bf16 %v627, %v627
    %v700 = vpack.c.bf16 %v692, %v692
    %v701 = vpack.c.bf16 %v693, %v693
    %v702 = vpack.c.bf16 %v694, %v694
    %v703 = vpack.c.bf16 %v695, %v695
    %706 = vrot.lane.b32.xlu0 %v357, 96
    %v707 = vpop.permute.xlu0 %706
    %708 = vrot.lane.b32.xlu0 %v361, 96
    %v709 = vpop.permute.xlu0 %708
    %712 = vrot.lane.b32.xlu0 %v357, 64
    %v713 = vpop.permute.xlu0 %712
    %714 = vrot.lane.b32.xlu0 %v361, 64
    %v715 = vpop.permute.xlu0 %714
    %718 = vrot.lane.b32.xlu0 %v357, 32
    %v719 = vpop.permute.xlu0 %718
    %720 = vrot.lane.b32.xlu0 %v361, 32
    %v721 = vpop.permute.xlu0 %720
    %v724 = vcombine.low %v357, %v713
    %v725 = vcombine.high %v357, %v713
    %v727 = vunpack.c.l.s4 1983009808
    %v728 = vunpack.c.0.s8 %v727
    %v729 = vlaneseq
    %v730 = vshrl.u32 %v729, 7
    %v731 = vsub.s32 %v728, %v730
    %v732 = vrot.slane %v724, %v731
    %v734 = vunpack.c.l.s4 1983009808
    %v735 = vunpack.c.0.s8 %v734
    %v736 = vlaneseq
    %v737 = vshrl.u32 %v736, 7
    %v738 = vsub.s32 %v735, %v737
    %v739 = vrot.slane %v725, %v738
    %v740 = vcombine.low %v707, %v719
    %v741 = vcombine.high %v707, %v719
    %v743 = vunpack.c.l.s4 1983009808
    %v744 = vunpack.c.0.s8 %v743
    %v745 = vlaneseq
    %v746 = vshrl.u32 %v745, 7
    %v747 = vsub.s32 %v744, %v746
    %v748 = vrot.slane %v740, %v747
    %v750 = vunpack.c.l.s4 1983009808
    %v751 = vunpack.c.0.s8 %v750
    %v752 = vlaneseq
    %v753 = vshrl.u32 %v752, 7
    %v754 = vsub.s32 %v751, %v753
    %v755 = vrot.slane %v741, %v754
    %v756 = vcombine.low %v732, %v748
    %v757 = vcombine.high %v732, %v748
    %v759 = vunpack.c.l.s4 1934713408
    %v760 = vunpack.c.0.s8 %v759
    %v761 = vlaneseq
    %v762 = vshrl.u32 %v761, 7
    %v763 = vsub.s32 %v760, %v762
    %v764 = vrot.slane %v756, %v763
    %v766 = vunpack.c.l.s4 1934713408
    %v767 = vunpack.c.0.s8 %v766
    %v768 = vlaneseq
    %v769 = vshrl.u32 %v768, 7
    %v770 = vsub.s32 %v767, %v769
    %v771 = vrot.slane %v757, %v770
    %v772 = vcombine.low %v739, %v755
    %v773 = vcombine.high %v739, %v755
    %v775 = vunpack.c.l.s4 1934713408
    %v776 = vunpack.c.0.s8 %v775
    %v777 = vlaneseq
    %v778 = vshrl.u32 %v777, 7
    %v779 = vsub.s32 %v776, %v778
    %v780 = vrot.slane %v772, %v779
    %v782 = vunpack.c.l.s4 1934713408
    %v783 = vunpack.c.0.s8 %v782
    %v784 = vlaneseq
    %v785 = vshrl.u32 %v784, 7
    %v786 = vsub.s32 %v783, %v785
    %v787 = vrot.slane %v773, %v786
    %v788 = vcombine.high %v764, 0.0
    %v789 = vcombine.high %v771, 0.0
    %v790 = vcombine.high %v780, 0.0
    %v791 = vcombine.high %v787, 0.0
    %v792 = vcombine.low %v361, %v715
    %v793 = vcombine.high %v361, %v715
    %v795 = vunpack.c.l.s4 1983009808
    %v796 = vunpack.c.0.s8 %v795
    %v797 = vlaneseq
    %v798 = vshrl.u32 %v797, 7
    %v799 = vsub.s32 %v796, %v798
    %v800 = vrot.slane %v792, %v799
    %v802 = vunpack.c.l.s4 1983009808
    %v803 = vunpack.c.0.s8 %v802
    %v804 = vlaneseq
    %v805 = vshrl.u32 %v804, 7
    %v806 = vsub.s32 %v803, %v805
    %v807 = vrot.slane %v793, %v806
    %v808 = vcombine.low %v709, %v721
    %v809 = vcombine.high %v709, %v721
    %v811 = vunpack.c.l.s4 1983009808
    %v812 = vunpack.c.0.s8 %v811
    %v813 = vlaneseq
    %v814 = vshrl.u32 %v813, 7
    %v815 = vsub.s32 %v812, %v814
    %v816 = vrot.slane %v808, %v815
    %v818 = vunpack.c.l.s4 1983009808
    %v819 = vunpack.c.0.s8 %v818
    %v820 = vlaneseq
    %v821 = vshrl.u32 %v820, 7
    %v822 = vsub.s32 %v819, %v821
    %v823 = vrot.slane %v809, %v822
    %v824 = vcombine.low %v800, %v816
    %v825 = vcombine.high %v800, %v816
    %v827 = vunpack.c.l.s4 1934713408
    %v828 = vunpack.c.0.s8 %v827
    %v829 = vlaneseq
    %v830 = vshrl.u32 %v829, 7
    %v831 = vsub.s32 %v828, %v830
    %v832 = vrot.slane %v824, %v831
    %v834 = vunpack.c.l.s4 1934713408
    %v835 = vunpack.c.0.s8 %v834
    %v836 = vlaneseq
    %v837 = vshrl.u32 %v836, 7
    %v838 = vsub.s32 %v835, %v837
    %v839 = vrot.slane %v825, %v838
    %v840 = vcombine.low %v807, %v823
    %v841 = vcombine.high %v807, %v823
    %v843 = vunpack.c.l.s4 1934713408
    %v844 = vunpack.c.0.s8 %v843
    %v845 = vlaneseq
    %v846 = vshrl.u32 %v845, 7
    %v847 = vsub.s32 %v844, %v846
    %v848 = vrot.slane %v840, %v847
    %v850 = vunpack.c.l.s4 1934713408
    %v851 = vunpack.c.0.s8 %v850
    %v852 = vlaneseq
    %v853 = vshrl.u32 %v852, 7
    %v854 = vsub.s32 %v851, %v853
    %v855 = vrot.slane %v841, %v854
    %v856 = vcombine.high %v832, 0.0
    %v857 = vcombine.high %v839, 0.0
    %v858 = vcombine.high %v848, 0.0
    %v859 = vcombine.high %v855, 0.0
    %v860 = vcombine.low %v764, %v771
    %v862 = vunpack.c.l.s4 1983009808
    %v863 = vunpack.c.0.s8 %v862
    %v864 = vlaneseq
    %v865 = vshrl.u32 %v864, 7
    %v866 = vsub.s32 %v863, %v865
    %v867 = vrot.slane %v860, %v866
    %v868 = vcombine.low %v788, %v789
    %v870 = vunpack.c.l.s4 1983009808
    %v871 = vunpack.c.0.s8 %v870
    %v872 = vlaneseq
    %v873 = vshrl.u32 %v872, 7
    %v874 = vsub.s32 %v871, %v873
    %v875 = vrot.slane %v868, %v874
    %v876 = vcombine.low %v780, %v787
    %v878 = vunpack.c.l.s4 1983009808
    %v879 = vunpack.c.0.s8 %v878
    %v880 = vlaneseq
    %v881 = vshrl.u32 %v880, 7
    %v882 = vsub.s32 %v879, %v881
    %v883 = vrot.slane %v876, %v882
    %v884 = vcombine.low %v790, %v791
    %v886 = vunpack.c.l.s4 1983009808
    %v887 = vunpack.c.0.s8 %v886
    %v888 = vlaneseq
    %v889 = vshrl.u32 %v888, 7
    %v890 = vsub.s32 %v887, %v889
    %v891 = vrot.slane %v884, %v890
    %v892 = vcombine.low %v867, %v875
    %v893 = vcombine.high %v867, %v875
    %v895 = vunpack.c.l.s4 1934713408
    %v896 = vunpack.c.0.s8 %v895
    %v897 = vlaneseq
    %v898 = vshrl.u32 %v897, 7
    %v899 = vsub.s32 %v896, %v898
    %v900 = vrot.slane %v892, %v899
    %v902 = vunpack.c.l.s4 1934713408
    %v903 = vunpack.c.0.s8 %v902
    %v904 = vlaneseq
    %v905 = vshrl.u32 %v904, 7
    %v906 = vsub.s32 %v903, %v905
    %v907 = vrot.slane %v893, %v906
    %v908 = vcombine.low %v883, %v891
    %v909 = vcombine.high %v883, %v891
    %v911 = vunpack.c.l.s4 1934713408
    %v912 = vunpack.c.0.s8 %v911
    %v913 = vlaneseq
    %v914 = vshrl.u32 %v913, 7
    %v915 = vsub.s32 %v912, %v914
    %v916 = vrot.slane %v908, %v915
    %v918 = vunpack.c.l.s4 1934713408
    %v919 = vunpack.c.0.s8 %v918
    %v920 = vlaneseq
    %v921 = vshrl.u32 %v920, 7
    %v922 = vsub.s32 %v919, %v921
    %v923 = vrot.slane %v909, %v922
    %v924 = vcombine.low %v900, %v916
    %v925 = vcombine.high %v900, %v916
    %v926 = vcombine.low %v907, %v923
    %v927 = vcombine.high %v907, %v923
    %v928 = vcombine.low %v832, %v839
    %v930 = vunpack.c.l.s4 1983009808
    %v931 = vunpack.c.0.s8 %v930
    %v932 = vlaneseq
    %v933 = vshrl.u32 %v932, 7
    %v934 = vsub.s32 %v931, %v933
    %v935 = vrot.slane %v928, %v934
    %v936 = vcombine.low %v856, %v857
    %v938 = vunpack.c.l.s4 1983009808
    %v939 = vunpack.c.0.s8 %v938
    %v940 = vlaneseq
    %v941 = vshrl.u32 %v940, 7
    %v942 = vsub.s32 %v939, %v941
    %v943 = vrot.slane %v936, %v942
    %v944 = vcombine.low %v848, %v855
    %v946 = vunpack.c.l.s4 1983009808
    %v947 = vunpack.c.0.s8 %v946
    %v948 = vlaneseq
    %v949 = vshrl.u32 %v948, 7
    %v950 = vsub.s32 %v947, %v949
    %v951 = vrot.slane %v944, %v950
    %v952 = vcombine.low %v858, %v859
    %v954 = vunpack.c.l.s4 1983009808
    %v955 = vunpack.c.0.s8 %v954
    %v956 = vlaneseq
    %v957 = vshrl.u32 %v956, 7
    %v958 = vsub.s32 %v955, %v957
    %v959 = vrot.slane %v952, %v958
    %v960 = vcombine.low %v935, %v943
    %v961 = vcombine.high %v935, %v943
    %v963 = vunpack.c.l.s4 1934713408
    %v964 = vunpack.c.0.s8 %v963
    %v965 = vlaneseq
    %v966 = vshrl.u32 %v965, 7
    %v967 = vsub.s32 %v964, %v966
    %v968 = vrot.slane %v960, %v967
    %v970 = vunpack.c.l.s4 1934713408
    %v971 = vunpack.c.0.s8 %v970
    %v972 = vlaneseq
    %v973 = vshrl.u32 %v972, 7
    %v974 = vsub.s32 %v971, %v973
    %v975 = vrot.slane %v961, %v974
    %v976 = vcombine.low %v951, %v959
    %v977 = vcombine.high %v951, %v959
    %v979 = vunpack.c.l.s4 1934713408
    %v980 = vunpack.c.0.s8 %v979
    %v981 = vlaneseq
    %v982 = vshrl.u32 %v981, 7
    %v983 = vsub.s32 %v980, %v982
    %v984 = vrot.slane %v976, %v983
    %v986 = vunpack.c.l.s4 1934713408
    %v987 = vunpack.c.0.s8 %v986
    %v988 = vlaneseq
    %v989 = vshrl.u32 %v988, 7
    %v990 = vsub.s32 %v987, %v989
    %v991 = vrot.slane %v977, %v990
    %v992 = vcombine.low %v968, %v984
    %v993 = vcombine.high %v968, %v984
    %v994 = vcombine.low %v975, %v991
    %v995 = vcombine.high %v975, %v991
    %v996 = vpack.c.bf16 %v924, %v924
    %v997 = vpack.c.bf16 %v925, %v925
    %v998 = vpack.c.bf16 %v926, %v926
    %v999 = vpack.c.bf16 %v927, %v927
    %v1000 = vpack.c.bf16 %v992, %v992
    %v1001 = vpack.c.bf16 %v993, %v993
    %v1002 = vpack.c.bf16 %v994, %v994
    %v1003 = vpack.c.bf16 %v995, %v995
    %1006 = vrot.lane.b32.xlu0 %v398, 96
    %v1007 = vpop.permute.xlu0 %1006
    %1008 = vrot.lane.b32.xlu0 %v401, 96
    %v1009 = vpop.permute.xlu0 %1008
    %1012 = vrot.lane.b32.xlu0 %v398, 64
    %v1013 = vpop.permute.xlu0 %1012
    %1014 = vrot.lane.b32.xlu0 %v401, 64
    %v1015 = vpop.permute.xlu0 %1014
    %1018 = vrot.lane.b32.xlu0 %v398, 32
    %v1019 = vpop.permute.xlu0 %1018
    %1020 = vrot.lane.b32.xlu0 %v401, 32
    %v1021 = vpop.permute.xlu0 %1020
    %v1024 = vcombine.low %v398, %v1013
    %v1025 = vcombine.high %v398, %v1013
    %v1027 = vunpack.c.l.s4 1983009808
    %v1028 = vunpack.c.0.s8 %v1027
    %v1029 = vlaneseq
    %v1030 = vshrl.u32 %v1029, 7
    %v1031 = vsub.s32 %v1028, %v1030
    %v1032 = vrot.slane %v1024, %v1031
    %v1034 = vunpack.c.l.s4 1983009808
    %v1035 = vunpack.c.0.s8 %v1034
    %v1036 = vlaneseq
    %v1037 = vshrl.u32 %v1036, 7
    %v1038 = vsub.s32 %v1035, %v1037
    %v1039 = vrot.slane %v1025, %v1038
    %v1040 = vcombine.low %v1007, %v1019
    %v1041 = vcombine.high %v1007, %v1019
    %v1043 = vunpack.c.l.s4 1983009808
    %v1044 = vunpack.c.0.s8 %v1043
    %v1045 = vlaneseq
    %v1046 = vshrl.u32 %v1045, 7
    %v1047 = vsub.s32 %v1044, %v1046
    %v1048 = vrot.slane %v1040, %v1047
    %v1050 = vunpack.c.l.s4 1983009808
    %v1051 = vunpack.c.0.s8 %v1050
    %v1052 = vlaneseq
    %v1053 = vshrl.u32 %v1052, 7
    %v1054 = vsub.s32 %v1051, %v1053
    %v1055 = vrot.slane %v1041, %v1054
    %v1056 = vcombine.low %v1032, %v1048
    %v1057 = vcombine.high %v1032, %v1048
    %v1059 = vunpack.c.l.s4 1934713408
    %v1060 = vunpack.c.0.s8 %v1059
    %v1061 = vlaneseq
    %v1062 = vshrl.u32 %v1061, 7
    %v1063 = vsub.s32 %v1060, %v1062
    %v1064 = vrot.slane %v1056, %v1063
    %v1066 = vunpack.c.l.s4 1934713408
    %v1067 = vunpack.c.0.s8 %v1066
    %v1068 = vlaneseq
    %v1069 = vshrl.u32 %v1068, 7
    %v1070 = vsub.s32 %v1067, %v1069
    %v1071 = vrot.slane %v1057, %v1070
    %v1072 = vcombine.low %v1039, %v1055
    %v1073 = vcombine.high %v1039, %v1055
    %v1075 = vunpack.c.l.s4 1934713408
    %v1076 = vunpack.c.0.s8 %v1075
    %v1077 = vlaneseq
    %v1078 = vshrl.u32 %v1077, 7
    %v1079 = vsub.s32 %v1076, %v1078
    %v1080 = vrot.slane %v1072, %v1079
    %v1082 = vunpack.c.l.s4 1934713408
    %v1083 = vunpack.c.0.s8 %v1082
    %v1084 = vlaneseq
    %v1085 = vshrl.u32 %v1084, 7
    %v1086 = vsub.s32 %v1083, %v1085
    %v1087 = vrot.slane %v1073, %v1086
    %v1088 = vcombine.high %v1064, 0.0
    %v1089 = vcombine.high %v1071, 0.0
    %v1090 = vcombine.high %v1080, 0.0
    %v1091 = vcombine.high %v1087, 0.0
    %v1092 = vcombine.low %v401, %v1015
    %v1093 = vcombine.high %v401, %v1015
    %v1095 = vunpack.c.l.s4 1983009808
    %v1096 = vunpack.c.0.s8 %v1095
    %v1097 = vlaneseq
    %v1098 = vshrl.u32 %v1097, 7
    %v1099 = vsub.s32 %v1096, %v1098
    %v1100 = vrot.slane %v1092, %v1099
    %v1102 = vunpack.c.l.s4 1983009808
    %v1103 = vunpack.c.0.s8 %v1102
    %v1104 = vlaneseq
    %v1105 = vshrl.u32 %v1104, 7
    %v1106 = vsub.s32 %v1103, %v1105
    %v1107 = vrot.slane %v1093, %v1106
    %v1108 = vcombine.low %v1009, %v1021
    %v1109 = vcombine.high %v1009, %v1021
    %v1111 = vunpack.c.l.s4 1983009808
    %v1112 = vunpack.c.0.s8 %v1111
    %v1113 = vlaneseq
    %v1114 = vshrl.u32 %v1113, 7
    %v1115 = vsub.s32 %v1112, %v1114
    %v1116 = vrot.slane %v1108, %v1115
    %v1118 = vunpack.c.l.s4 1983009808
    %v1119 = vunpack.c.0.s8 %v1118
    %v1120 = vlaneseq
    %v1121 = vshrl.u32 %v1120, 7
    %v1122 = vsub.s32 %v1119, %v1121
    %v1123 = vrot.slane %v1109, %v1122
    %v1124 = vcombine.low %v1100, %v1116
    %v1125 = vcombine.high %v1100, %v1116
    %v1127 = vunpack.c.l.s4 1934713408
    %v1128 = vunpack.c.0.s8 %v1127
    %v1129 = vlaneseq
    %v1130 = vshrl.u32 %v1129, 7
    %v1131 = vsub.s32 %v1128, %v1130
    %v1132 = vrot.slane %v1124, %v1131
    %v1134 = vunpack.c.l.s4 1934713408
    %v1135 = vunpack.c.0.s8 %v1134
    %v1136 = vlaneseq
    %v1137 = vshrl.u32 %v1136, 7
    %v1138 = vsub.s32 %v1135, %v1137
    %v1139 = vrot.slane %v1125, %v1138
    %v1140 = vcombine.low %v1107, %v1123
    %v1141 = vcombine.high %v1107, %v1123
    %v1143 = vunpack.c.l.s4 1934713408
    %v1144 = vunpack.c.0.s8 %v1143
    %v1145 = vlaneseq
    %v1146 = vshrl.u32 %v1145, 7
    %v1147 = vsub.s32 %v1144, %v1146
    %v1148 = vrot.slane %v1140, %v1147
    %v1150 = vunpack.c.l.s4 1934713408
    %v1151 = vunpack.c.0.s8 %v1150
    %v1152 = vlaneseq
    %v1153 = vshrl.u32 %v1152, 7
    %v1154 = vsub.s32 %v1151, %v1153
    %v1155 = vrot.slane %v1141, %v1154
    %v1156 = vcombine.high %v1132, 0.0
    %v1157 = vcombine.high %v1139, 0.0
    %v1158 = vcombine.high %v1148, 0.0
    %v1159 = vcombine.high %v1155, 0.0
    %v1160 = vcombine.low %v1064, %v1071
    %v1162 = vunpack.c.l.s4 1983009808
    %v1163 = vunpack.c.0.s8 %v1162
    %v1164 = vlaneseq
    %v1165 = vshrl.u32 %v1164, 7
    %v1166 = vsub.s32 %v1163, %v1165
    %v1167 = vrot.slane %v1160, %v1166
    %v1168 = vcombine.low %v1088, %v1089
    %v1170 = vunpack.c.l.s4 1983009808
    %v1171 = vunpack.c.0.s8 %v1170
    %v1172 = vlaneseq
    %v1173 = vshrl.u32 %v1172, 7
    %v1174 = vsub.s32 %v1171, %v1173
    %v1175 = vrot.slane %v1168, %v1174
    %v1176 = vcombine.low %v1080, %v1087
    %v1178 = vunpack.c.l.s4 1983009808
    %v1179 = vunpack.c.0.s8 %v1178
    %v1180 = vlaneseq
    %v1181 = vshrl.u32 %v1180, 7
    %v1182 = vsub.s32 %v1179, %v1181
    %v1183 = vrot.slane %v1176, %v1182
    %v1184 = vcombine.low %v1090, %v1091
    %v1186 = vunpack.c.l.s4 1983009808
    %v1187 = vunpack.c.0.s8 %v1186
    %v1188 = vlaneseq
    %v1189 = vshrl.u32 %v1188, 7
    %v1190 = vsub.s32 %v1187, %v1189
    %v1191 = vrot.slane %v1184, %v1190
    %v1192 = vcombine.low %v1167, %v1175
    %v1193 = vcombine.high %v1167, %v1175
    %v1195 = vunpack.c.l.s4 1934713408
    %v1196 = vunpack.c.0.s8 %v1195
    %v1197 = vlaneseq
    %v1198 = vshrl.u32 %v1197, 7
    %v1199 = vsub.s32 %v1196, %v1198
    %v1200 = vrot.slane %v1192, %v1199
    %v1202 = vunpack.c.l.s4 1934713408
    %v1203 = vunpack.c.0.s8 %v1202
    %v1204 = vlaneseq
    %v1205 = vshrl.u32 %v1204, 7
    %v1206 = vsub.s32 %v1203, %v1205
    %v1207 = vrot.slane %v1193, %v1206
    %v1208 = vcombine.low %v1183, %v1191
    %v1209 = vcombine.high %v1183, %v1191
    %v1211 = vunpack.c.l.s4 1934713408
    %v1212 = vunpack.c.0.s8 %v1211
    %v1213 = vlaneseq
    %v1214 = vshrl.u32 %v1213, 7
    %v1215 = vsub.s32 %v1212, %v1214
    %v1216 = vrot.slane %v1208, %v1215
    %v1218 = vunpack.c.l.s4 1934713408
    %v1219 = vunpack.c.0.s8 %v1218
    %v1220 = vlaneseq
    %v1221 = vshrl.u32 %v1220, 7
    %v1222 = vsub.s32 %v1219, %v1221
    %v1223 = vrot.slane %v1209, %v1222
    %v1224 = vcombine.low %v1200, %v1216
    %v1225 = vcombine.high %v1200, %v1216
    %v1226 = vcombine.low %v1207, %v1223
    %v1227 = vcombine.high %v1207, %v1223
    %v1228 = vcombine.low %v1132, %v1139
    %v1230 = vunpack.c.l.s4 1983009808
    %v1231 = vunpack.c.0.s8 %v1230
    %v1232 = vlaneseq
    %v1233 = vshrl.u32 %v1232, 7
    %v1234 = vsub.s32 %v1231, %v1233
    %v1235 = vrot.slane %v1228, %v1234
    %v1236 = vcombine.low %v1156, %v1157
    %v1238 = vunpack.c.l.s4 1983009808
    %v1239 = vunpack.c.0.s8 %v1238
    %v1240 = vlaneseq
    %v1241 = vshrl.u32 %v1240, 7
    %v1242 = vsub.s32 %v1239, %v1241
    %v1243 = vrot.slane %v1236, %v1242
    %v1244 = vcombine.low %v1148, %v1155
    %v1246 = vunpack.c.l.s4 1983009808
    %v1247 = vunpack.c.0.s8 %v1246
    %v1248 = vlaneseq
    %v1249 = vshrl.u32 %v1248, 7
    %v1250 = vsub.s32 %v1247, %v1249
    %v1251 = vrot.slane %v1244, %v1250
    %v1252 = vcombine.low %v1158, %v1159
    %v1254 = vunpack.c.l.s4 1983009808
    %v1255 = vunpack.c.0.s8 %v1254
    %v1256 = vlaneseq
    %v1257 = vshrl.u32 %v1256, 7
    %v1258 = vsub.s32 %v1255, %v1257
    %v1259 = vrot.slane %v1252, %v1258
    %v1260 = vcombine.low %v1235, %v1243
    %v1261 = vcombine.high %v1235, %v1243
    %v1263 = vunpack.c.l.s4 1934713408
    %v1264 = vunpack.c.0.s8 %v1263
    %v1265 = vlaneseq
    %v1266 = vshrl.u32 %v1265, 7
    %v1267 = vsub.s32 %v1264, %v1266
    %v1268 = vrot.slane %v1260, %v1267
    %v1270 = vunpack.c.l.s4 1934713408
    %v1271 = vunpack.c.0.s8 %v1270
    %v1272 = vlaneseq
    %v1273 = vshrl.u32 %v1272, 7
    %v1274 = vsub.s32 %v1271, %v1273
    %v1275 = vrot.slane %v1261, %v1274
    %v1276 = vcombine.low %v1251, %v1259
    %v1277 = vcombine.high %v1251, %v1259
    %v1279 = vunpack.c.l.s4 1934713408
    %v1280 = vunpack.c.0.s8 %v1279
    %v1281 = vlaneseq
    %v1282 = vshrl.u32 %v1281, 7
    %v1283 = vsub.s32 %v1280, %v1282
    %v1284 = vrot.slane %v1276, %v1283
    %v1286 = vunpack.c.l.s4 1934713408
    %v1287 = vunpack.c.0.s8 %v1286
    %v1288 = vlaneseq
    %v1289 = vshrl.u32 %v1288, 7
    %v1290 = vsub.s32 %v1287, %v1289
    %v1291 = vrot.slane %v1277, %v1290
    %v1292 = vcombine.low %v1268, %v1284
    %v1293 = vcombine.high %v1268, %v1284
    %v1294 = vcombine.low %v1275, %v1291
    %v1295 = vcombine.high %v1275, %v1291
    %v1296 = vpack.c.bf16 %v1224, %v1224
    %v1297 = vpack.c.bf16 %v1225, %v1225
    %v1298 = vpack.c.bf16 %v1226, %v1226
    %v1299 = vpack.c.bf16 %v1227, %v1227
    %v1300 = vpack.c.bf16 %v1292, %v1292
    %v1301 = vpack.c.bf16 %v1293, %v1293
    %v1302 = vpack.c.bf16 %v1294, %v1294
    %v1303 = vpack.c.bf16 %v1295, %v1295
    %vm1304 = vcmask 261120
    %v1306 = vsel %vm1304, %v696, 0
    %v1309 = vsel %vm1304, %v996, 0
    %1311 = vmatprep.subr.bf16.mxu0 0
    %1312 = vmatpush1.bf16.xpose.msra.mxu0 %v1309
    %1313 = vmatprep.subr.bf16.mxu0 0
    %1314 = vmatpush1.bf16.xpose.msra.mxu0 0
    %1315 = vmatprep.subr.bf16.mxu0 0
    %1316 = vmatpush1.bf16.xpose.msra.mxu0 0
    %1317 = vmatprep.subr.bf16.mxu0 0
    %1318 = vmatpush1.bf16.xpose.msra.mxu0 0
    %1319 = vmatprep.subr.bf16.mxu0 0
    %1320 = vmatpush1.bf16.xpose.msra.mxu0 0
    %1321 = vmatprep.subr.bf16.mxu0 0
    %1322 = vmatpush1.bf16.xpose.msra.mxu0 0
    %1323 = vmatprep.subr.bf16.mxu0 0
    %1324 = vmatpush1.bf16.xpose.msra.mxu0 0
    %1325 = vmatprep.subr.bf16.mxu0 0
    %1326 = vmatpush1.bf16.xpose.msra.mxu0 0
    %1327 = vmatprep.subr.bf16.mxu0 0
    %1328 = vmatpush1.bf16.xpose.msra.mxu0 0
    %1329 = vmatprep.subr.bf16.mxu0 0
    %1330 = vmatpush1.bf16.xpose.msra.mxu0 0
    %1331 = vmatprep.subr.bf16.mxu0 0
    %1332 = vmatpush1.bf16.xpose.msra.mxu0 0
    %1333 = vmatprep.subr.bf16.mxu0 0
    %1334 = vmatpush1.bf16.xpose.msra.mxu0 0
    %1335 = vmatprep.subr.bf16.mxu0 0
    %1336 = vmatpush1.bf16.xpose.msra.mxu0 0
    %1337 = vmatprep.subr.bf16.mxu0 0
    %1338 = vmatpush1.bf16.xpose.msra.mxu0 0
    %1339 = vmatprep.subr.bf16.mxu0 0
    %1340 = vmatpush1.bf16.xpose.msra.mxu0 0
    %1341 = vmatprep.subr.bf16.mxu0 0
    %1342 = vmatpush1.bf16.xpose.msra.mxu0 0
    %1343 = vmatprep.mubr.bf16.mxu0 0
    %1344 = vmatmul.mubr.bf16.gmra.mrb[0].mxu0 %v1306
    %v1345 = vpop.f32.mrb[0].mxu0
    %v1346 = vadd.f32 0.0, %v1345
    %v1347 = vpop.f32.mrb[0].mxu0
    %v1348 = vpop.f32.mrb[0].mxu0
    %v1349 = vpop.f32.mrb[0].mxu0
    %1350 = vdwg.mxu0
    %v1352 = vsel %vm1304, %v697, 0
    %v1355 = vsel %vm1304, %v997, 0
    %1357 = vmatprep.subr.bf16.mxu0 0
    %1358 = vmatpush1.bf16.xpose.msra.mxu0 %v1355
    %1359 = vmatprep.subr.bf16.mxu0 0
    %1360 = vmatpush1.bf16.xpose.msra.mxu0 0
    %1361 = vmatprep.subr.bf16.mxu0 0
    %1362 = vmatpush1.bf16.xpose.msra.mxu0 0
    %1363 = vmatprep.subr.bf16.mxu0 0
    %1364 = vmatpush1.bf16.xpose.msra.mxu0 0
    %1365 = vmatprep.subr.bf16.mxu0 0
    %1366 = vmatpush1.bf16.xpose.msra.mxu0 0
    %1367 = vmatprep.subr.bf16.mxu0 0
    %1368 = vmatpush1.bf16.xpose.msra.mxu0 0
    %1369 = vmatprep.subr.bf16.mxu0 0
    %1370 = vmatpush1.bf16.xpose.msra.mxu0 0
    %1371 = vmatprep.subr.bf16.mxu0 0
    %1372 = vmatpush1.bf16.xpose.msra.mxu0 0
    %1373 = vmatprep.subr.bf16.mxu0 0
    %1374 = vmatpush1.bf16.xpose.msra.mxu0 0
    %1375 = vmatprep.subr.bf16.mxu0 0
    %1376 = vmatpush1.bf16.xpose.msra.mxu0 0
    %1377 = vmatprep.subr.bf16.mxu0 0
    %1378 = vmatpush1.bf16.xpose.msra.mxu0 0
    %1379 = vmatprep.subr.bf16.mxu0 0
    %1380 = vmatpush1.bf16.xpose.msra.mxu0 0
    %1381 = vmatprep.subr.bf16.mxu0 0
    %1382 = vmatpush1.bf16.xpose.msra.mxu0 0
    %1383 = vmatprep.subr.bf16.mxu0 0
    %1384 = vmatpush1.bf16.xpose.msra.mxu0 0
    %1385 = vmatprep.subr.bf16.mxu0 0
    %1386 = vmatpush1.bf16.xpose.msra.mxu0 0
    %1387 = vmatprep.subr.bf16.mxu0 0
    %1388 = vmatpush1.bf16.xpose.msra.mxu0 0
    %1389 = vmatprep.mubr.bf16.mxu0 0
    %1390 = vmatmul.mubr.bf16.gmra.mrb[0].mxu0 %v1352
    %v1391 = vpop.f32.mrb[0].mxu0
    %v1392 = vadd.f32 0.0, %v1391
    %v1393 = vpop.f32.mrb[0].mxu0
    %v1394 = vpop.f32.mrb[0].mxu0
    %v1395 = vpop.f32.mrb[0].mxu0
    %1396 = vdwg.mxu0
    %v1398 = vsel %vm1304, %v698, 0
    %v1401 = vsel %vm1304, %v998, 0
    %1403 = vmatprep.subr.bf16.mxu0 0
    %1404 = vmatpush1.bf16.xpose.msra.mxu0 %v1401
    %1405 = vmatprep.subr.bf16.mxu0 0
    %1406 = vmatpush1.bf16.xpose.msra.mxu0 0
    %1407 = vmatprep.subr.bf16.mxu0 0
    %1408 = vmatpush1.bf16.xpose.msra.mxu0 0
    %1409 = vmatprep.subr.bf16.mxu0 0
    %1410 = vmatpush1.bf16.xpose.msra.mxu0 0
    %1411 = vmatprep.subr.bf16.mxu0 0
    %1412 = vmatpush1.bf16.xpose.msra.mxu0 0
    %1413 = vmatprep.subr.bf16.mxu0 0
    %1414 = vmatpush1.bf16.xpose.msra.mxu0 0
    %1415 = vmatprep.subr.bf16.mxu0 0
    %1416 = vmatpush1.bf16.xpose.msra.mxu0 0
    %1417 = vmatprep.subr.bf16.mxu0 0
    %1418 = vmatpush1.bf16.xpose.msra.mxu0 0
    %1419 = vmatprep.subr.bf16.mxu0 0
    %1420 = vmatpush1.bf16.xpose.msra.mxu0 0
    %1421 = vmatprep.subr.bf16.mxu0 0
    %1422 = vmatpush1.bf16.xpose.msra.mxu0 0
    %1423 = vmatprep.subr.bf16.mxu0 0
    %1424 = vmatpush1.bf16.xpose.msra.mxu0 0
    %1425 = vmatprep.subr.bf16.mxu0 0
    %1426 = vmatpush1.bf16.xpose.msra.mxu0 0
    %1427 = vmatprep.subr.bf16.mxu0 0
    %1428 = vmatpush1.bf16.xpose.msra.mxu0 0
    %1429 = vmatprep.subr.bf16.mxu0 0
    %1430 = vmatpush1.bf16.xpose.msra.mxu0 0
    %1431 = vmatprep.subr.bf16.mxu0 0
    %1432 = vmatpush1.bf16.xpose.msra.mxu0 0
    %1433 = vmatprep.subr.bf16.mxu0 0
    %1434 = vmatpush1.bf16.xpose.msra.mxu0 0
    %1435 = vmatprep.mubr.bf16.mxu0 0
    %1436 = vmatmul.mubr.bf16.gmra.mrb[0].mxu0 %v1398
    %v1437 = vpop.f32.mrb[0].mxu0
    %v1438 = vadd.f32 0.0, %v1437
    %v1439 = vpop.f32.mrb[0].mxu0
    %v1440 = vpop.f32.mrb[0].mxu0
    %v1441 = vpop.f32.mrb[0].mxu0
    %1442 = vdwg.mxu0
    %v1444 = vsel %vm1304, %v699, 0
    %v1447 = vsel %vm1304, %v999, 0
    %1449 = vmatprep.subr.bf16.mxu0 0
    %1450 = vmatpush1.bf16.xpose.msra.mxu0 %v1447
    %1451 = vmatprep.subr.bf16.mxu0 0
    %1452 = vmatpush1.bf16.xpose.msra.mxu0 0
    %1453 = vmatprep.subr.bf16.mxu0 0
    %1454 = vmatpush1.bf16.xpose.msra.mxu0 0
    %1455 = vmatprep.subr.bf16.mxu0 0
    %1456 = vmatpush1.bf16.xpose.msra.mxu0 0
    %1457 = vmatprep.subr.bf16.mxu0 0
    %1458 = vmatpush1.bf16.xpose.msra.mxu0 0
    %1459 = vmatprep.subr.bf16.mxu0 0
    %1460 = vmatpush1.bf16.xpose.msra.mxu0 0
    %1461 = vmatprep.subr.bf16.mxu0 0
    %1462 = vmatpush1.bf16.xpose.msra.mxu0 0
    %1463 = vmatprep.subr.bf16.mxu0 0
    %1464 = vmatpush1.bf16.xpose.msra.mxu0 0
    %1465 = vmatprep.subr.bf16.mxu0 0
    %1466 = vmatpush1.bf16.xpose.msra.mxu0 0
    %1467 = vmatprep.subr.bf16.mxu0 0
    %1468 = vmatpush1.bf16.xpose.msra.mxu0 0
    %1469 = vmatprep.subr.bf16.mxu0 0
    %1470 = vmatpush1.bf16.xpose.msra.mxu0 0
    %1471 = vmatprep.subr.bf16.mxu0 0
    %1472 = vmatpush1.bf16.xpose.msra.mxu0 0
    %1473 = vmatprep.subr.bf16.mxu0 0
    %1474 = vmatpush1.bf16.xpose.msra.mxu0 0
    %1475 = vmatprep.subr.bf16.mxu0 0
    %1476 = vmatpush1.bf16.xpose.msra.mxu0 0
    %1477 = vmatprep.subr.bf16.mxu0 0
    %1478 = vmatpush1.bf16.xpose.msra.mxu0 0
    %1479 = vmatprep.subr.bf16.mxu0 0
    %1480 = vmatpush1.bf16.xpose.msra.mxu0 0
    %1481 = vmatprep.mubr.bf16.mxu0 0
    %1482 = vmatmul.mubr.bf16.gmra.mrb[0].mxu0 %v1444
    %v1483 = vpop.f32.mrb[0].mxu0
    %v1484 = vadd.f32 0.0, %v1483
    %v1485 = vpop.f32.mrb[0].mxu0
    %v1486 = vpop.f32.mrb[0].mxu0
    %v1487 = vpop.f32.mrb[0].mxu0
    %1488 = vdwg.mxu0
    %v1490 = vsel %vm1304, %v700, 0
    %v1493 = vsel %vm1304, %v1000, 0
    %1495 = vmatprep.subr.bf16.mxu0 0
    %1496 = vmatpush1.bf16.xpose.msra.mxu0 %v1493
    %1497 = vmatprep.subr.bf16.mxu0 0
    %1498 = vmatpush1.bf16.xpose.msra.mxu0 0
    %1499 = vmatprep.subr.bf16.mxu0 0
    %1500 = vmatpush1.bf16.xpose.msra.mxu0 0
    %1501 = vmatprep.subr.bf16.mxu0 0
    %1502 = vmatpush1.bf16.xpose.msra.mxu0 0
    %1503 = vmatprep.subr.bf16.mxu0 0
    %1504 = vmatpush1.bf16.xpose.msra.mxu0 0
    %1505 = vmatprep.subr.bf16.mxu0 0
    %1506 = vmatpush1.bf16.xpose.msra.mxu0 0
    %1507 = vmatprep.subr.bf16.mxu0 0
    %1508 = vmatpush1.bf16.xpose.msra.mxu0 0
    %1509 = vmatprep.subr.bf16.mxu0 0
    %1510 = vmatpush1.bf16.xpose.msra.mxu0 0
    %1511 = vmatprep.subr.bf16.mxu0 0
    %1512 = vmatpush1.bf16.xpose.msra.mxu0 0
    %1513 = vmatprep.subr.bf16.mxu0 0
    %1514 = vmatpush1.bf16.xpose.msra.mxu0 0
    %1515 = vmatprep.subr.bf16.mxu0 0
    %1516 = vmatpush1.bf16.xpose.msra.mxu0 0
    %1517 = vmatprep.subr.bf16.mxu0 0
    %1518 = vmatpush1.bf16.xpose.msra.mxu0 0
    %1519 = vmatprep.subr.bf16.mxu0 0
    %1520 = vmatpush1.bf16.xpose.msra.mxu0 0
    %1521 = vmatprep.subr.bf16.mxu0 0
    %1522 = vmatpush1.bf16.xpose.msra.mxu0 0
    %1523 = vmatprep.subr.bf16.mxu0 0
    %1524 = vmatpush1.bf16.xpose.msra.mxu0 0
    %1525 = vmatprep.subr.bf16.mxu0 0
    %1526 = vmatpush1.bf16.xpose.msra.mxu0 0
    %1527 = vmatprep.mubr.bf16.mxu0 0
    %1528 = vmatmul.mubr.bf16.gmra.mrb[0].mxu0 %v1490
    %v1529 = vpop.f32.mrb[0].mxu0
    %v1530 = vadd.f32 0.0, %v1529
    %v1531 = vpop.f32.mrb[0].mxu0
    %v1532 = vpop.f32.mrb[0].mxu0
    %v1533 = vpop.f32.mrb[0].mxu0
    %1534 = vdwg.mxu0
    %v1536 = vsel %vm1304, %v701, 0
    %v1539 = vsel %vm1304, %v1001, 0
    %1541 = vmatprep.subr.bf16.mxu0 0
    %1542 = vmatpush1.bf16.xpose.msra.mxu0 %v1539
    %1543 = vmatprep.subr.bf16.mxu0 0
    %1544 = vmatpush1.bf16.xpose.msra.mxu0 0
    %1545 = vmatprep.subr.bf16.mxu0 0
    %1546 = vmatpush1.bf16.xpose.msra.mxu0 0
    %1547 = vmatprep.subr.bf16.mxu0 0
    %1548 = vmatpush1.bf16.xpose.msra.mxu0 0
    %1549 = vmatprep.subr.bf16.mxu0 0
    %1550 = vmatpush1.bf16.xpose.msra.mxu0 0
    %1551 = vmatprep.subr.bf16.mxu0 0
    %1552 = vmatpush1.bf16.xpose.msra.mxu0 0
    %1553 = vmatprep.subr.bf16.mxu0 0
    %1554 = vmatpush1.bf16.xpose.msra.mxu0 0
    %1555 = vmatprep.subr.bf16.mxu0 0
    %1556 = vmatpush1.bf16.xpose.msra.mxu0 0
    %1557 = vmatprep.subr.bf16.mxu0 0
    %1558 = vmatpush1.bf16.xpose.msra.mxu0 0
    %1559 = vmatprep.subr.bf16.mxu0 0
    %1560 = vmatpush1.bf16.xpose.msra.mxu0 0
    %1561 = vmatprep.subr.bf16.mxu0 0
    %1562 = vmatpush1.bf16.xpose.msra.mxu0 0
    %1563 = vmatprep.subr.bf16.mxu0 0
    %1564 = vmatpush1.bf16.xpose.msra.mxu0 0
    %1565 = vmatprep.subr.bf16.mxu0 0
    %1566 = vmatpush1.bf16.xpose.msra.mxu0 0
    %1567 = vmatprep.subr.bf16.mxu0 0
    %1568 = vmatpush1.bf16.xpose.msra.mxu0 0
    %1569 = vmatprep.subr.bf16.mxu0 0
    %1570 = vmatpush1.bf16.xpose.msra.mxu0 0
    %1571 = vmatprep.subr.bf16.mxu0 0
    %1572 = vmatpush1.bf16.xpose.msra.mxu0 0
    %1573 = vmatprep.mubr.bf16.mxu0 0
    %1574 = vmatmul.mubr.bf16.gmra.mrb[0].mxu0 %v1536
    %v1575 = vpop.f32.mrb[0].mxu0
    %v1576 = vadd.f32 0.0, %v1575
    %v1577 = vpop.f32.mrb[0].mxu0
    %v1578 = vpop.f32.mrb[0].mxu0
    %v1579 = vpop.f32.mrb[0].mxu0
    %1580 = vdwg.mxu0
    %v1582 = vsel %vm1304, %v702, 0
    %v1585 = vsel %vm1304, %v1002, 0
    %1587 = vmatprep.subr.bf16.mxu0 0
    %1588 = vmatpush1.bf16.xpose.msra.mxu0 %v1585
    %1589 = vmatprep.subr.bf16.mxu0 0
    %1590 = vmatpush1.bf16.xpose.msra.mxu0 0
    %1591 = vmatprep.subr.bf16.mxu0 0
    %1592 = vmatpush1.bf16.xpose.msra.mxu0 0
    %1593 = vmatprep.subr.bf16.mxu0 0
    %1594 = vmatpush1.bf16.xpose.msra.mxu0 0
    %1595 = vmatprep.subr.bf16.mxu0 0
    %1596 = vmatpush1.bf16.xpose.msra.mxu0 0
    %1597 = vmatprep.subr.bf16.mxu0 0
    %1598 = vmatpush1.bf16.xpose.msra.mxu0 0
    %1599 = vmatprep.subr.bf16.mxu0 0
    %1600 = vmatpush1.bf16.xpose.msra.mxu0 0
    %1601 = vmatprep.subr.bf16.mxu0 0
    %1602 = vmatpush1.bf16.xpose.msra.mxu0 0
    %1603 = vmatprep.subr.bf16.mxu0 0
    %1604 = vmatpush1.bf16.xpose.msra.mxu0 0
    %1605 = vmatprep.subr.bf16.mxu0 0
    %1606 = vmatpush1.bf16.xpose.msra.mxu0 0
    %1607 = vmatprep.subr.bf16.mxu0 0
    %1608 = vmatpush1.bf16.xpose.msra.mxu0 0
    %1609 = vmatprep.subr.bf16.mxu0 0
    %1610 = vmatpush1.bf16.xpose.msra.mxu0 0
    %1611 = vmatprep.subr.bf16.mxu0 0
    %1612 = vmatpush1.bf16.xpose.msra.mxu0 0
    %1613 = vmatprep.subr.bf16.mxu0 0
    %1614 = vmatpush1.bf16.xpose.msra.mxu0 0
    %1615 = vmatprep.subr.bf16.mxu0 0
    %1616 = vmatpush1.bf16.xpose.msra.mxu0 0
    %1617 = vmatprep.subr.bf16.mxu0 0
    %1618 = vmatpush1.bf16.xpose.msra.mxu0 0
    %1619 = vmatprep.mubr.bf16.mxu0 0
    %1620 = vmatmul.mubr.bf16.gmra.mrb[0].mxu0 %v1582
    %v1621 = vpop.f32.mrb[0].mxu0
    %v1622 = vadd.f32 0.0, %v1621
    %v1623 = vpop.f32.mrb[0].mxu0
    %v1624 = vpop.f32.mrb[0].mxu0
    %v1625 = vpop.f32.mrb[0].mxu0
    %1626 = vdwg.mxu0
    %v1628 = vsel %vm1304, %v703, 0
    %v1631 = vsel %vm1304, %v1003, 0
    %1633 = vmatprep.subr.bf16.mxu0 0
    %1634 = vmatpush1.bf16.xpose.msra.mxu0 %v1631
    %1635 = vmatprep.subr.bf16.mxu0 0
    %1636 = vmatpush1.bf16.xpose.msra.mxu0 0
    %1637 = vmatprep.subr.bf16.mxu0 0
    %1638 = vmatpush1.bf16.xpose.msra.mxu0 0
    %1639 = vmatprep.subr.bf16.mxu0 0
    %1640 = vmatpush1.bf16.xpose.msra.mxu0 0
    %1641 = vmatprep.subr.bf16.mxu0 0
    %1642 = vmatpush1.bf16.xpose.msra.mxu0 0
    %1643 = vmatprep.subr.bf16.mxu0 0
    %1644 = vmatpush1.bf16.xpose.msra.mxu0 0
    %1645 = vmatprep.subr.bf16.mxu0 0
    %1646 = vmatpush1.bf16.xpose.msra.mxu0 0
    %1647 = vmatprep.subr.bf16.mxu0 0
    %1648 = vmatpush1.bf16.xpose.msra.mxu0 0
    %1649 = vmatprep.subr.bf16.mxu0 0
    %1650 = vmatpush1.bf16.xpose.msra.mxu0 0
    %1651 = vmatprep.subr.bf16.mxu0 0
    %1652 = vmatpush1.bf16.xpose.msra.mxu0 0
    %1653 = vmatprep.subr.bf16.mxu0 0
    %1654 = vmatpush1.bf16.xpose.msra.mxu0 0
    %1655 = vmatprep.subr.bf16.mxu0 0
    %1656 = vmatpush1.bf16.xpose.msra.mxu0 0
    %1657 = vmatprep.subr.bf16.mxu0 0
    %1658 = vmatpush1.bf16.xpose.msra.mxu0 0
    %1659 = vmatprep.subr.bf16.mxu0 0
    %1660 = vmatpush1.bf16.xpose.msra.mxu0 0
    %1661 = vmatprep.subr.bf16.mxu0 0
    %1662 = vmatpush1.bf16.xpose.msra.mxu0 0
    %1663 = vmatprep.subr.bf16.mxu0 0
    %1664 = vmatpush1.bf16.xpose.msra.mxu0 0
    %1665 = vmatprep.mubr.bf16.mxu0 0
    %1666 = vmatmul.mubr.bf16.gmra.mrb[0].mxu0 %v1628
    %v1667 = vpop.f32.mrb[0].mxu0
    %v1668 = vadd.f32 0.0, %v1667
    %v1669 = vpop.f32.mrb[0].mxu0
    %v1670 = vpop.f32.mrb[0].mxu0
    %v1671 = vpop.f32.mrb[0].mxu0
    %1672 = vdwg.mxu0
    %v1673 = vmul.f32 %v1346, 0.088388346
    %v1674 = vmul.f32 %v1392, 0.088388346
    %v1675 = vmul.f32 %v1438, 0.088388346
    %v1676 = vmul.f32 %v1484, 0.088388346
    %v1677 = vmul.f32 %v1530, 0.088388346
    %v1678 = vmul.f32 %v1576, 0.088388346
    %v1679 = vmul.f32 %v1622, 0.088388346
    %v1680 = vmul.f32 %v1668, 0.088388346
    %vm1681 = vcmask 64512
    %v1682 = vsel %vm1681, %v1673, -inf
    %1683 = vmax.xlane.f32.xlu0 %v1682
    %v1684 = vpop.xlane.xlu0 %1683
    %v1685 = vsel %vm1681, %v1674, -inf
    %1686 = vmax.xlane.f32.xlu0 %v1685
    %v1687 = vpop.xlane.xlu0 %1686
    %v1688 = vsel %vm1681, %v1675, -inf
    %1689 = vmax.xlane.f32.xlu0 %v1688
    %v1690 = vpop.xlane.xlu0 %1689
    %v1691 = vsel %vm1681, %v1676, -inf
    %1692 = vmax.xlane.f32.xlu0 %v1691
    %v1693 = vpop.xlane.xlu0 %1692
    %v1694 = vsel %vm1681, %v1677, -inf
    %1695 = vmax.xlane.f32.xlu0 %v1694
    %v1696 = vpop.xlane.xlu0 %1695
    %v1697 = vsel %vm1681, %v1678, -inf
    %1698 = vmax.xlane.f32.xlu0 %v1697
    %v1699 = vpop.xlane.xlu0 %1698
    %v1700 = vsel %vm1681, %v1679, -inf
    %1701 = vmax.xlane.f32.xlu0 %v1700
    %v1702 = vpop.xlane.xlu0 %1701
    %v1703 = vsel %vm1681, %v1680, -inf
    %1704 = vmax.xlane.f32.xlu0 %v1703
    %v1705 = vpop.xlane.xlu0 %1704
    %v1706 = vsub.f32 %v1673, %v1684
    %v1707 = vsub.f32 %v1674, %v1687
    %v1708 = vsub.f32 %v1675, %v1690
    %v1709 = vsub.f32 %v1676, %v1693
    %v1710 = vsub.f32 %v1677, %v1696
    %v1711 = vsub.f32 %v1678, %v1699
    %v1712 = vsub.f32 %v1679, %v1702
    %v1713 = vsub.f32 %v1680, %v1705
    %v1714 = vmul.f32 %v1706, 1.442695
    %v1715 = vpow.pop %v1714
    %v1716 = vmul.f32 %v1707, 1.442695
    %v1717 = vpow.pop %v1716
    %v1718 = vmul.f32 %v1708, 1.442695
    %v1719 = vpow.pop %v1718
    %v1720 = vmul.f32 %v1709, 1.442695
    %v1721 = vpow.pop %v1720
    %v1722 = vmul.f32 %v1710, 1.442695
    %v1723 = vpow.pop %v1722
    %v1724 = vmul.f32 %v1711, 1.442695
    %v1725 = vpow.pop %v1724
    %v1726 = vmul.f32 %v1712, 1.442695
    %v1727 = vpow.pop %v1726
    %v1728 = vmul.f32 %v1713, 1.442695
    %v1729 = vpow.pop %v1728
    %v1730 = vsel %vm1681, %v1715, 0.0
    %1731 = vadd.xlane.f32.xlu0 %v1730
    %v1732 = vpop.xlane.xlu0 %1731
    %v1733 = vsel %vm1681, %v1717, 0.0
    %1734 = vadd.xlane.f32.xlu0 %v1733
    %v1735 = vpop.xlane.xlu0 %1734
    %v1736 = vsel %vm1681, %v1719, 0.0
    %1737 = vadd.xlane.f32.xlu0 %v1736
    %v1738 = vpop.xlane.xlu0 %1737
    %v1739 = vsel %vm1681, %v1721, 0.0
    %1740 = vadd.xlane.f32.xlu0 %v1739
    %v1741 = vpop.xlane.xlu0 %1740
    %v1742 = vsel %vm1681, %v1723, 0.0
    %1743 = vadd.xlane.f32.xlu0 %v1742
    %v1744 = vpop.xlane.xlu0 %1743
    %v1745 = vsel %vm1681, %v1725, 0.0
    %1746 = vadd.xlane.f32.xlu0 %v1745
    %v1747 = vpop.xlane.xlu0 %1746
    %v1748 = vsel %vm1681, %v1727, 0.0
    %1749 = vadd.xlane.f32.xlu0 %v1748
    %v1750 = vpop.xlane.xlu0 %1749
    %v1751 = vsel %vm1681, %v1729, 0.0
    %1752 = vadd.xlane.f32.xlu0 %v1751
    %v1753 = vpop.xlane.xlu0 %1752
    %v1754 = vrcp.pop %v1732
    %v1755 = vrcp.pop %v1735
    %v1756 = vrcp.pop %v1738
    %v1757 = vrcp.pop %v1741
    %v1758 = vrcp.pop %v1744
    %v1759 = vrcp.pop %v1747
    %v1760 = vrcp.pop %v1750
    %v1761 = vrcp.pop %v1753
    %v1762 = vmul.f32 %v1715, %v1754
    %v1763 = vmul.f32 %v1717, %v1755
    %v1764 = vmul.f32 %v1719, %v1756
    %v1765 = vmul.f32 %v1721, %v1757
    %v1766 = vmul.f32 %v1723, %v1758
    %v1767 = vmul.f32 %v1725, %v1759
    %v1768 = vmul.f32 %v1727, %v1760
    %v1769 = vmul.f32 %v1729, %v1761
    %v1770 = vpack.c.bf16 %v1762, %v1762
    %v1771 = vpack.c.bf16 %v1763, %v1763
    %v1772 = vpack.c.bf16 %v1764, %v1764
    %v1773 = vpack.c.bf16 %v1765, %v1765
    %v1774 = vpack.c.bf16 %v1766, %v1766
    %v1775 = vpack.c.bf16 %v1767, %v1767
    %v1776 = vpack.c.bf16 %v1768, %v1768
    %v1777 = vpack.c.bf16 %v1769, %v1769
    %v1779 = vsel %vm1681, %v1770, 0
    %vm1781 = vcmask 1043456
    %v1783 = vsel %vm1781, %v1296, 0
    %1785 = vmatprep.subr.bf16.mxu0 0
    %1786 = vmatpush1.bf16.msra.mxu0 %v1783
    %1787 = vmatprep.subr.bf16.mxu0 0
    %1788 = vmatpush1.bf16.msra.mxu0 0
    %1789 = vmatprep.subr.bf16.mxu0 0
    %1790 = vmatpush1.bf16.msra.mxu0 0
    %1791 = vmatprep.subr.bf16.mxu0 0
    %1792 = vmatpush1.bf16.msra.mxu0 0
    %1793 = vmatprep.subr.bf16.mxu0 0
    %1794 = vmatpush1.bf16.msra.mxu0 0
    %1795 = vmatprep.subr.bf16.mxu0 0
    %1796 = vmatpush1.bf16.msra.mxu0 0
    %1797 = vmatprep.subr.bf16.mxu0 0
    %1798 = vmatpush1.bf16.msra.mxu0 0
    %1799 = vmatprep.subr.bf16.mxu0 0
    %1800 = vmatpush1.bf16.msra.mxu0 0
    %1801 = vmatprep.subr.bf16.mxu0 0
    %1802 = vmatpush1.bf16.msra.mxu0 0
    %1803 = vmatprep.subr.bf16.mxu0 0
    %1804 = vmatpush1.bf16.msra.mxu0 0
    %1805 = vmatprep.subr.bf16.mxu0 0
    %1806 = vmatpush1.bf16.msra.mxu0 0
    %1807 = vmatprep.subr.bf16.mxu0 0
    %1808 = vmatpush1.bf16.msra.mxu0 0
    %1809 = vmatprep.subr.bf16.mxu0 0
    %1810 = vmatpush1.bf16.msra.mxu0 0
    %1811 = vmatprep.subr.bf16.mxu0 0
    %1812 = vmatpush1.bf16.msra.mxu0 0
    %1813 = vmatprep.subr.bf16.mxu0 0
    %1814 = vmatpush1.bf16.msra.mxu0 0
    %1815 = vmatprep.subr.bf16.mxu0 0
    %1816 = vmatpush1.bf16.msra.mxu0 0
    %1817 = vmatprep.mubr.bf16.mxu0 0
    %1818 = vmatmul.mubr.bf16.gmra.mrb[0].mxu0 %v1779
    %v1819 = vpop.f32.mrb[0].mxu0
    %v1820 = vadd.f32 0.0, %v1819
    %v1821 = vpop.f32.mrb[0].mxu0
    %v1822 = vpop.f32.mrb[0].mxu0
    %v1823 = vpop.f32.mrb[0].mxu0
    %1824 = vdwg.mxu0
    %v1826 = vsel %vm1681, %v1771, 0
    %v1829 = vsel %vm1781, %v1297, 0
    %1831 = vmatprep.subr.bf16.mxu0 0
    %1832 = vmatpush1.bf16.msra.mxu0 %v1829
    %1833 = vmatprep.subr.bf16.mxu0 0
    %1834 = vmatpush1.bf16.msra.mxu0 0
    %1835 = vmatprep.subr.bf16.mxu0 0
    %1836 = vmatpush1.bf16.msra.mxu0 0
    %1837 = vmatprep.subr.bf16.mxu0 0
    %1838 = vmatpush1.bf16.msra.mxu0 0
    %1839 = vmatprep.subr.bf16.mxu0 0
    %1840 = vmatpush1.bf16.msra.mxu0 0
    %1841 = vmatprep.subr.bf16.mxu0 0
    %1842 = vmatpush1.bf16.msra.mxu0 0
    %1843 = vmatprep.subr.bf16.mxu0 0
    %1844 = vmatpush1.bf16.msra.mxu0 0
    %1845 = vmatprep.subr.bf16.mxu0 0
    %1846 = vmatpush1.bf16.msra.mxu0 0
    %1847 = vmatprep.subr.bf16.mxu0 0
    %1848 = vmatpush1.bf16.msra.mxu0 0
    %1849 = vmatprep.subr.bf16.mxu0 0
    %1850 = vmatpush1.bf16.msra.mxu0 0
    %1851 = vmatprep.subr.bf16.mxu0 0
    %1852 = vmatpush1.bf16.msra.mxu0 0
    %1853 = vmatprep.subr.bf16.mxu0 0
    %1854 = vmatpush1.bf16.msra.mxu0 0
    %1855 = vmatprep.subr.bf16.mxu0 0
    %1856 = vmatpush1.bf16.msra.mxu0 0
    %1857 = vmatprep.subr.bf16.mxu0 0
    %1858 = vmatpush1.bf16.msra.mxu0 0
    %1859 = vmatprep.subr.bf16.mxu0 0
    %1860 = vmatpush1.bf16.msra.mxu0 0
    %1861 = vmatprep.subr.bf16.mxu0 0
    %1862 = vmatpush1.bf16.msra.mxu0 0
    %1863 = vmatprep.mubr.bf16.mxu0 0
    %1864 = vmatmul.mubr.bf16.gmra.mrb[0].mxu0 %v1826
    %v1865 = vpop.f32.mrb[0].mxu0
    %v1866 = vadd.f32 0.0, %v1865
    %v1867 = vpop.f32.mrb[0].mxu0
    %v1868 = vpop.f32.mrb[0].mxu0
    %v1869 = vpop.f32.mrb[0].mxu0
    %1870 = vdwg.mxu0
    %v1872 = vsel %vm1681, %v1772, 0
    %v1875 = vsel %vm1781, %v1298, 0
    %1877 = vmatprep.subr.bf16.mxu0 0
    %1878 = vmatpush1.bf16.msra.mxu0 %v1875
    %1879 = vmatprep.subr.bf16.mxu0 0
    %1880 = vmatpush1.bf16.msra.mxu0 0
    %1881 = vmatprep.subr.bf16.mxu0 0
    %1882 = vmatpush1.bf16.msra.mxu0 0
    %1883 = vmatprep.subr.bf16.mxu0 0
    %1884 = vmatpush1.bf16.msra.mxu0 0
    %1885 = vmatprep.subr.bf16.mxu0 0
    %1886 = vmatpush1.bf16.msra.mxu0 0
    %1887 = vmatprep.subr.bf16.mxu0 0
    %1888 = vmatpush1.bf16.msra.mxu0 0
    %1889 = vmatprep.subr.bf16.mxu0 0
    %1890 = vmatpush1.bf16.msra.mxu0 0
    %1891 = vmatprep.subr.bf16.mxu0 0
    %1892 = vmatpush1.bf16.msra.mxu0 0
    %1893 = vmatprep.subr.bf16.mxu0 0
    %1894 = vmatpush1.bf16.msra.mxu0 0
    %1895 = vmatprep.subr.bf16.mxu0 0
    %1896 = vmatpush1.bf16.msra.mxu0 0
    %1897 = vmatprep.subr.bf16.mxu0 0
    %1898 = vmatpush1.bf16.msra.mxu0 0
    %1899 = vmatprep.subr.bf16.mxu0 0
    %1900 = vmatpush1.bf16.msra.mxu0 0
    %1901 = vmatprep.subr.bf16.mxu0 0
    %1902 = vmatpush1.bf16.msra.mxu0 0
    %1903 = vmatprep.subr.bf16.mxu0 0
    %1904 = vmatpush1.bf16.msra.mxu0 0
    %1905 = vmatprep.subr.bf16.mxu0 0
    %1906 = vmatpush1.bf16.msra.mxu0 0
    %1907 = vmatprep.subr.bf16.mxu0 0
    %1908 = vmatpush1.bf16.msra.mxu0 0
    %1909 = vmatprep.mubr.bf16.mxu0 0
    %1910 = vmatmul.mubr.bf16.gmra.mrb[0].mxu0 %v1872
    %v1911 = vpop.f32.mrb[0].mxu0
    %v1912 = vadd.f32 0.0, %v1911
    %v1913 = vpop.f32.mrb[0].mxu0
    %v1914 = vpop.f32.mrb[0].mxu0
    %v1915 = vpop.f32.mrb[0].mxu0
    %1916 = vdwg.mxu0
    %v1918 = vsel %vm1681, %v1773, 0
    %v1921 = vsel %vm1781, %v1299, 0
    %1923 = vmatprep.subr.bf16.mxu0 0
    %1924 = vmatpush1.bf16.msra.mxu0 %v1921
    %1925 = vmatprep.subr.bf16.mxu0 0
    %1926 = vmatpush1.bf16.msra.mxu0 0
    %1927 = vmatprep.subr.bf16.mxu0 0
    %1928 = vmatpush1.bf16.msra.mxu0 0
    %1929 = vmatprep.subr.bf16.mxu0 0
    %1930 = vmatpush1.bf16.msra.mxu0 0
    %1931 = vmatprep.subr.bf16.mxu0 0
    %1932 = vmatpush1.bf16.msra.mxu0 0
    %1933 = vmatprep.subr.bf16.mxu0 0
    %1934 = vmatpush1.bf16.msra.mxu0 0
    %1935 = vmatprep.subr.bf16.mxu0 0
    %1936 = vmatpush1.bf16.msra.mxu0 0
    %1937 = vmatprep.subr.bf16.mxu0 0
    %1938 = vmatpush1.bf16.msra.mxu0 0
    %1939 = vmatprep.subr.bf16.mxu0 0
    %1940 = vmatpush1.bf16.msra.mxu0 0
    %1941 = vmatprep.subr.bf16.mxu0 0
    %1942 = vmatpush1.bf16.msra.mxu0 0
    %1943 = vmatprep.subr.bf16.mxu0 0
    %1944 = vmatpush1.bf16.msra.mxu0 0
    %1945 = vmatprep.subr.bf16.mxu0 0
    %1946 = vmatpush1.bf16.msra.mxu0 0
    %1947 = vmatprep.subr.bf16.mxu0 0
    %1948 = vmatpush1.bf16.msra.mxu0 0
    %1949 = vmatprep.subr.bf16.mxu0 0
    %1950 = vmatpush1.bf16.msra.mxu0 0
    %1951 = vmatprep.subr.bf16.mxu0 0
    %1952 = vmatpush1.bf16.msra.mxu0 0
    %1953 = vmatprep.subr.bf16.mxu0 0
    %1954 = vmatpush1.bf16.msra.mxu0 0
    %1955 = vmatprep.mubr.bf16.mxu0 0
    %1956 = vmatmul.mubr.bf16.gmra.mrb[0].mxu0 %v1918
    %v1957 = vpop.f32.mrb[0].mxu0
    %v1958 = vadd.f32 0.0, %v1957
    %v1959 = vpop.f32.mrb[0].mxu0
    %v1960 = vpop.f32.mrb[0].mxu0
    %v1961 = vpop.f32.mrb[0].mxu0
    %1962 = vdwg.mxu0
    %v1964 = vsel %vm1681, %v1774, 0
    %v1967 = vsel %vm1781, %v1300, 0
    %1969 = vmatprep.subr.bf16.mxu0 0
    %1970 = vmatpush1.bf16.msra.mxu0 %v1967
    %1971 = vmatprep.subr.bf16.mxu0 0
    %1972 = vmatpush1.bf16.msra.mxu0 0
    %1973 = vmatprep.subr.bf16.mxu0 0
    %1974 = vmatpush1.bf16.msra.mxu0 0
    %1975 = vmatprep.subr.bf16.mxu0 0
    %1976 = vmatpush1.bf16.msra.mxu0 0
    %1977 = vmatprep.subr.bf16.mxu0 0
    %1978 = vmatpush1.bf16.msra.mxu0 0
    %1979 = vmatprep.subr.bf16.mxu0 0
    %1980 = vmatpush1.bf16.msra.mxu0 0
    %1981 = vmatprep.subr.bf16.mxu0 0
    %1982 = vmatpush1.bf16.msra.mxu0 0
    %1983 = vmatprep.subr.bf16.mxu0 0
    %1984 = vmatpush1.bf16.msra.mxu0 0
    %1985 = vmatprep.subr.bf16.mxu0 0
    %1986 = vmatpush1.bf16.msra.mxu0 0
    %1987 = vmatprep.subr.bf16.mxu0 0
    %1988 = vmatpush1.bf16.msra.mxu0 0
    %1989 = vmatprep.subr.bf16.mxu0 0
    %1990 = vmatpush1.bf16.msra.mxu0 0
    %1991 = vmatprep.subr.bf16.mxu0 0
    %1992 = vmatpush1.bf16.msra.mxu0 0
    %1993 = vmatprep.subr.bf16.mxu0 0
    %1994 = vmatpush1.bf16.msra.mxu0 0
    %1995 = vmatprep.subr.bf16.mxu0 0
    %1996 = vmatpush1.bf16.msra.mxu0 0
    %1997 = vmatprep.subr.bf16.mxu0 0
    %1998 = vmatpush1.bf16.msra.mxu0 0
    %1999 = vmatprep.subr.bf16.mxu0 0
    %2000 = vmatpush1.bf16.msra.mxu0 0
    %2001 = vmatprep.mubr.bf16.mxu0 0
    %2002 = vmatmul.mubr.bf16.gmra.mrb[0].mxu0 %v1964
    %v2003 = vpop.f32.mrb[0].mxu0
    %v2004 = vadd.f32 0.0, %v2003
    %v2005 = vpop.f32.mrb[0].mxu0
    %v2006 = vpop.f32.mrb[0].mxu0
    %v2007 = vpop.f32.mrb[0].mxu0
    %2008 = vdwg.mxu0
    %v2010 = vsel %vm1681, %v1775, 0
    %v2013 = vsel %vm1781, %v1301, 0
    %2015 = vmatprep.subr.bf16.mxu0 0
    %2016 = vmatpush1.bf16.msra.mxu0 %v2013
    %2017 = vmatprep.subr.bf16.mxu0 0
    %2018 = vmatpush1.bf16.msra.mxu0 0
    %2019 = vmatprep.subr.bf16.mxu0 0
    %2020 = vmatpush1.bf16.msra.mxu0 0
    %2021 = vmatprep.subr.bf16.mxu0 0
    %2022 = vmatpush1.bf16.msra.mxu0 0
    %2023 = vmatprep.subr.bf16.mxu0 0
    %2024 = vmatpush1.bf16.msra.mxu0 0
    %2025 = vmatprep.subr.bf16.mxu0 0
    %2026 = vmatpush1.bf16.msra.mxu0 0
    %2027 = vmatprep.subr.bf16.mxu0 0
    %2028 = vmatpush1.bf16.msra.mxu0 0
    %2029 = vmatprep.subr.bf16.mxu0 0
    %2030 = vmatpush1.bf16.msra.mxu0 0
    %2031 = vmatprep.subr.bf16.mxu0 0
    %2032 = vmatpush1.bf16.msra.mxu0 0
    %2033 = vmatprep.subr.bf16.mxu0 0
    %2034 = vmatpush1.bf16.msra.mxu0 0
    %2035 = vmatprep.subr.bf16.mxu0 0
    %2036 = vmatpush1.bf16.msra.mxu0 0
    %2037 = vmatprep.subr.bf16.mxu0 0
    %2038 = vmatpush1.bf16.msra.mxu0 0
    %2039 = vmatprep.subr.bf16.mxu0 0
    %2040 = vmatpush1.bf16.msra.mxu0 0
    %2041 = vmatprep.subr.bf16.mxu0 0
    %2042 = vmatpush1.bf16.msra.mxu0 0
    %2043 = vmatprep.subr.bf16.mxu0 0
    %2044 = vmatpush1.bf16.msra.mxu0 0
    %2045 = vmatprep.subr.bf16.mxu0 0
    %2046 = vmatpush1.bf16.msra.mxu0 0
    %2047 = vmatprep.mubr.bf16.mxu0 0
    %2048 = vmatmul.mubr.bf16.gmra.mrb[0].mxu0 %v2010
    %v2049 = vpop.f32.mrb[0].mxu0
    %v2050 = vadd.f32 0.0, %v2049
    %v2051 = vpop.f32.mrb[0].mxu0
    %v2052 = vpop.f32.mrb[0].mxu0
    %v2053 = vpop.f32.mrb[0].mxu0
    %2054 = vdwg.mxu0
    %v2056 = vsel %vm1681, %v1776, 0
    %v2059 = vsel %vm1781, %v1302, 0
    %2061 = vmatprep.subr.bf16.mxu0 0
    %2062 = vmatpush1.bf16.msra.mxu0 %v2059
    %2063 = vmatprep.subr.bf16.mxu0 0
    %2064 = vmatpush1.bf16.msra.mxu0 0
    %2065 = vmatprep.subr.bf16.mxu0 0
    %2066 = vmatpush1.bf16.msra.mxu0 0
    %2067 = vmatprep.subr.bf16.mxu0 0
    %2068 = vmatpush1.bf16.msra.mxu0 0
    %2069 = vmatprep.subr.bf16.mxu0 0
    %2070 = vmatpush1.bf16.msra.mxu0 0
    %2071 = vmatprep.subr.bf16.mxu0 0
    %2072 = vmatpush1.bf16.msra.mxu0 0
    %2073 = vmatprep.subr.bf16.mxu0 0
    %2074 = vmatpush1.bf16.msra.mxu0 0
    %2075 = vmatprep.subr.bf16.mxu0 0
    %2076 = vmatpush1.bf16.msra.mxu0 0
    %2077 = vmatprep.subr.bf16.mxu0 0
    %2078 = vmatpush1.bf16.msra.mxu0 0
    %2079 = vmatprep.subr.bf16.mxu0 0
    %2080 = vmatpush1.bf16.msra.mxu0 0
    %2081 = vmatprep.subr.bf16.mxu0 0
    %2082 = vmatpush1.bf16.msra.mxu0 0
    %2083 = vmatprep.subr.bf16.mxu0 0
    %2084 = vmatpush1.bf16.msra.mxu0 0
    %2085 = vmatprep.subr.bf16.mxu0 0
    %2086 = vmatpush1.bf16.msra.mxu0 0
    %2087 = vmatprep.subr.bf16.mxu0 0
    %2088 = vmatpush1.bf16.msra.mxu0 0
    %2089 = vmatprep.subr.bf16.mxu0 0
    %2090 = vmatpush1.bf16.msra.mxu0 0
    %2091 = vmatprep.subr.bf16.mxu0 0
    %2092 = vmatpush1.bf16.msra.mxu0 0
    %2093 = vmatprep.mubr.bf16.mxu0 0
    %2094 = vmatmul.mubr.bf16.gmra.mrb[0].mxu0 %v2056
    %v2095 = vpop.f32.mrb[0].mxu0
    %v2096 = vadd.f32 0.0, %v2095
    %v2097 = vpop.f32.mrb[0].mxu0
    %v2098 = vpop.f32.mrb[0].mxu0
    %v2099 = vpop.f32.mrb[0].mxu0
    %2100 = vdwg.mxu0
    %v2102 = vsel %vm1681, %v1777, 0
    %v2105 = vsel %vm1781, %v1303, 0
    %2107 = vmatprep.subr.bf16.mxu0 0
    %2108 = vmatpush1.bf16.msra.mxu0 %v2105
    %2109 = vmatprep.subr.bf16.mxu0 0
    %2110 = vmatpush1.bf16.msra.mxu0 0
    %2111 = vmatprep.subr.bf16.mxu0 0
    %2112 = vmatpush1.bf16.msra.mxu0 0
    %2113 = vmatprep.subr.bf16.mxu0 0
    %2114 = vmatpush1.bf16.msra.mxu0 0
    %2115 = vmatprep.subr.bf16.mxu0 0
    %2116 = vmatpush1.bf16.msra.mxu0 0
    %2117 = vmatprep.subr.bf16.mxu0 0
    %2118 = vmatpush1.bf16.msra.mxu0 0
    %2119 = vmatprep.subr.bf16.mxu0 0
    %2120 = vmatpush1.bf16.msra.mxu0 0
    %2121 = vmatprep.subr.bf16.mxu0 0
    %2122 = vmatpush1.bf16.msra.mxu0 0
    %2123 = vmatprep.subr.bf16.mxu0 0
    %2124 = vmatpush1.bf16.msra.mxu0 0
    %2125 = vmatprep.subr.bf16.mxu0 0
    %2126 = vmatpush1.bf16.msra.mxu0 0
    %2127 = vmatprep.subr.bf16.mxu0 0
    %2128 = vmatpush1.bf16.msra.mxu0 0
    %2129 = vmatprep.subr.bf16.mxu0 0
    %2130 = vmatpush1.bf16.msra.mxu0 0
    %2131 = vmatprep.subr.bf16.mxu0 0
    %2132 = vmatpush1.bf16.msra.mxu0 0
    %2133 = vmatprep.subr.bf16.mxu0 0
    %2134 = vmatpush1.bf16.msra.mxu0 0
    %2135 = vmatprep.subr.bf16.mxu0 0
    %2136 = vmatpush1.bf16.msra.mxu0 0
    %2137 = vmatprep.subr.bf16.mxu0 0
    %2138 = vmatpush1.bf16.msra.mxu0 0
    %2139 = vmatprep.mubr.bf16.mxu0 0
    %2140 = vmatmul.mubr.bf16.gmra.mrb[0].mxu0 %v2102
    %v2141 = vpop.f32.mrb[0].mxu0
    %v2142 = vadd.f32 0.0, %v2141
    %v2143 = vpop.f32.mrb[0].mxu0
    %v2144 = vpop.f32.mrb[0].mxu0
    %v2145 = vpop.f32.mrb[0].mxu0
    %2146 = vdwg.mxu0
    %v2147 = vcombine.low %v1820, %v1912
    %v2148 = vcombine.high %v1820, %v1912
    %v2150 = vunpack.c.l.s4 1983009808
    %v2151 = vunpack.c.0.s8 %v2150
    %v2152 = vlaneseq
    %v2153 = vshrl.u32 %v2152, 7
    %v2154 = vsub.s32 %v2151, %v2153
    %v2155 = vrot.slane %v2147, %v2154
    %v2157 = vunpack.c.l.s4 1983009808
    %v2158 = vunpack.c.0.s8 %v2157
    %v2159 = vlaneseq
    %v2160 = vshrl.u32 %v2159, 7
    %v2161 = vsub.s32 %v2158, %v2160
    %v2162 = vrot.slane %v2148, %v2161
    %v2163 = vcombine.low %v1866, %v1958
    %v2164 = vcombine.high %v1866, %v1958
    %v2166 = vunpack.c.l.s4 1983009808
    %v2167 = vunpack.c.0.s8 %v2166
    %v2168 = vlaneseq
    %v2169 = vshrl.u32 %v2168, 7
    %v2170 = vsub.s32 %v2167, %v2169
    %v2171 = vrot.slane %v2163, %v2170
    %v2173 = vunpack.c.l.s4 1983009808
    %v2174 = vunpack.c.0.s8 %v2173
    %v2175 = vlaneseq
    %v2176 = vshrl.u32 %v2175, 7
    %v2177 = vsub.s32 %v2174, %v2176
    %v2178 = vrot.slane %v2164, %v2177
    %v2179 = vcombine.low %v2155, %v2171
    %v2180 = vcombine.high %v2155, %v2171
    %v2182 = vunpack.c.l.s4 1934713408
    %v2183 = vunpack.c.0.s8 %v2182
    %v2184 = vlaneseq
    %v2185 = vshrl.u32 %v2184, 7
    %v2186 = vsub.s32 %v2183, %v2185
    %v2187 = vrot.slane %v2179, %v2186
    %v2189 = vunpack.c.l.s4 1934713408
    %v2190 = vunpack.c.0.s8 %v2189
    %v2191 = vlaneseq
    %v2192 = vshrl.u32 %v2191, 7
    %v2193 = vsub.s32 %v2190, %v2192
    %v2194 = vrot.slane %v2180, %v2193
    %v2195 = vcombine.low %v2162, %v2178
    %v2196 = vcombine.high %v2162, %v2178
    %v2198 = vunpack.c.l.s4 1934713408
    %v2199 = vunpack.c.0.s8 %v2198
    %v2200 = vlaneseq
    %v2201 = vshrl.u32 %v2200, 7
    %v2202 = vsub.s32 %v2199, %v2201
    %v2203 = vrot.slane %v2195, %v2202
    %v2205 = vunpack.c.l.s4 1934713408
    %v2206 = vunpack.c.0.s8 %v2205
    %v2207 = vlaneseq
    %v2208 = vshrl.u32 %v2207, 7
    %v2209 = vsub.s32 %v2206, %v2208
    %v2210 = vrot.slane %v2196, %v2209
    %v2211 = vcombine.high %v2187, 0.0
    %v2212 = vcombine.high %v2194, 0.0
    %v2213 = vcombine.high %v2203, 0.0
    %v2214 = vcombine.high %v2210, 0.0
    %v2215 = vcombine.low %v2004, %v2096
    %v2216 = vcombine.high %v2004, %v2096
    %v2218 = vunpack.c.l.s4 1983009808
    %v2219 = vunpack.c.0.s8 %v2218
    %v2220 = vlaneseq
    %v2221 = vshrl.u32 %v2220, 7
    %v2222 = vsub.s32 %v2219, %v2221
    %v2223 = vrot.slane %v2215, %v2222
    %v2225 = vunpack.c.l.s4 1983009808
    %v2226 = vunpack.c.0.s8 %v2225
    %v2227 = vlaneseq
    %v2228 = vshrl.u32 %v2227, 7
    %v2229 = vsub.s32 %v2226, %v2228
    %v2230 = vrot.slane %v2216, %v2229
    %v2231 = vcombine.low %v2050, %v2142
    %v2232 = vcombine.high %v2050, %v2142
    %v2234 = vunpack.c.l.s4 1983009808
    %v2235 = vunpack.c.0.s8 %v2234
    %v2236 = vlaneseq
    %v2237 = vshrl.u32 %v2236, 7
    %v2238 = vsub.s32 %v2235, %v2237
    %v2239 = vrot.slane %v2231, %v2238
    %v2241 = vunpack.c.l.s4 1983009808
    %v2242 = vunpack.c.0.s8 %v2241
    %v2243 = vlaneseq
    %v2244 = vshrl.u32 %v2243, 7
    %v2245 = vsub.s32 %v2242, %v2244
    %v2246 = vrot.slane %v2232, %v2245
    %v2247 = vcombine.low %v2223, %v2239
    %v2248 = vcombine.high %v2223, %v2239
    %v2250 = vunpack.c.l.s4 1934713408
    %v2251 = vunpack.c.0.s8 %v2250
    %v2252 = vlaneseq
    %v2253 = vshrl.u32 %v2252, 7
    %v2254 = vsub.s32 %v2251, %v2253
    %v2255 = vrot.slane %v2247, %v2254
    %v2257 = vunpack.c.l.s4 1934713408
    %v2258 = vunpack.c.0.s8 %v2257
    %v2259 = vlaneseq
    %v2260 = vshrl.u32 %v2259, 7
    %v2261 = vsub.s32 %v2258, %v2260
    %v2262 = vrot.slane %v2248, %v2261
    %v2263 = vcombine.low %v2230, %v2246
    %v2264 = vcombine.high %v2230, %v2246
    %v2266 = vunpack.c.l.s4 1934713408
    %v2267 = vunpack.c.0.s8 %v2266
    %v2268 = vlaneseq
    %v2269 = vshrl.u32 %v2268, 7
    %v2270 = vsub.s32 %v2267, %v2269
    %v2271 = vrot.slane %v2263, %v2270
    %v2273 = vunpack.c.l.s4 1934713408
    %v2274 = vunpack.c.0.s8 %v2273
    %v2275 = vlaneseq
    %v2276 = vshrl.u32 %v2275, 7
    %v2277 = vsub.s32 %v2274, %v2276
    %v2278 = vrot.slane %v2264, %v2277
    %v2279 = vcombine.high %v2255, 0.0
    %v2280 = vcombine.high %v2262, 0.0
    %v2281 = vcombine.high %v2271, 0.0
    %v2282 = vcombine.high %v2278, 0.0
    %v2283 = vcombine.low %v2187, %v2194
    %v2285 = vunpack.c.l.s4 1983009808
    %v2286 = vunpack.c.0.s8 %v2285
    %v2287 = vlaneseq
    %v2288 = vshrl.u32 %v2287, 7
    %v2289 = vsub.s32 %v2286, %v2288
    %v2290 = vrot.slane %v2283, %v2289
    %v2291 = vcombine.low %v2211, %v2212
    %v2293 = vunpack.c.l.s4 1983009808
    %v2294 = vunpack.c.0.s8 %v2293
    %v2295 = vlaneseq
    %v2296 = vshrl.u32 %v2295, 7
    %v2297 = vsub.s32 %v2294, %v2296
    %v2298 = vrot.slane %v2291, %v2297
    %v2299 = vcombine.low %v2203, %v2210
    %v2301 = vunpack.c.l.s4 1983009808
    %v2302 = vunpack.c.0.s8 %v2301
    %v2303 = vlaneseq
    %v2304 = vshrl.u32 %v2303, 7
    %v2305 = vsub.s32 %v2302, %v2304
    %v2306 = vrot.slane %v2299, %v2305
    %v2307 = vcombine.low %v2213, %v2214
    %v2309 = vunpack.c.l.s4 1983009808
    %v2310 = vunpack.c.0.s8 %v2309
    %v2311 = vlaneseq
    %v2312 = vshrl.u32 %v2311, 7
    %v2313 = vsub.s32 %v2310, %v2312
    %v2314 = vrot.slane %v2307, %v2313
    %v2315 = vcombine.low %v2290, %v2298
    %v2316 = vcombine.high %v2290, %v2298
    %v2318 = vunpack.c.l.s4 1934713408
    %v2319 = vunpack.c.0.s8 %v2318
    %v2320 = vlaneseq
    %v2321 = vshrl.u32 %v2320, 7
    %v2322 = vsub.s32 %v2319, %v2321
    %v2323 = vrot.slane %v2315, %v2322
    %v2325 = vunpack.c.l.s4 1934713408
    %v2326 = vunpack.c.0.s8 %v2325
    %v2327 = vlaneseq
    %v2328 = vshrl.u32 %v2327, 7
    %v2329 = vsub.s32 %v2326, %v2328
    %v2330 = vrot.slane %v2316, %v2329
    %v2331 = vcombine.low %v2306, %v2314
    %v2332 = vcombine.high %v2306, %v2314
    %v2334 = vunpack.c.l.s4 1934713408
    %v2335 = vunpack.c.0.s8 %v2334
    %v2336 = vlaneseq
    %v2337 = vshrl.u32 %v2336, 7
    %v2338 = vsub.s32 %v2335, %v2337
    %v2339 = vrot.slane %v2331, %v2338
    %v2341 = vunpack.c.l.s4 1934713408
    %v2342 = vunpack.c.0.s8 %v2341
    %v2343 = vlaneseq
    %v2344 = vshrl.u32 %v2343, 7
    %v2345 = vsub.s32 %v2342, %v2344
    %v2346 = vrot.slane %v2332, %v2345
    %v2347 = vcombine.low %v2323, %v2339
    %v2348 = vcombine.high %v2323, %v2339
    %v2349 = vcombine.low %v2330, %v2346
    %v2350 = vcombine.high %v2330, %v2346
    %v2351 = vcombine.low %v2255, %v2262
    %v2353 = vunpack.c.l.s4 1983009808
    %v2354 = vunpack.c.0.s8 %v2353
    %v2355 = vlaneseq
    %v2356 = vshrl.u32 %v2355, 7
    %v2357 = vsub.s32 %v2354, %v2356
    %v2358 = vrot.slane %v2351, %v2357
    %v2359 = vcombine.low %v2279, %v2280
    %v2361 = vunpack.c.l.s4 1983009808
    %v2362 = vunpack.c.0.s8 %v2361
    %v2363 = vlaneseq
    %v2364 = vshrl.u32 %v2363, 7
    %v2365 = vsub.s32 %v2362, %v2364
    %v2366 = vrot.slane %v2359, %v2365
    %v2367 = vcombine.low %v2271, %v2278
    %v2369 = vunpack.c.l.s4 1983009808
    %v2370 = vunpack.c.0.s8 %v2369
    %v2371 = vlaneseq
    %v2372 = vshrl.u32 %v2371, 7
    %v2373 = vsub.s32 %v2370, %v2372
    %v2374 = vrot.slane %v2367, %v2373
    %v2375 = vcombine.low %v2281, %v2282
    %v2377 = vunpack.c.l.s4 1983009808
    %v2378 = vunpack.c.0.s8 %v2377
    %v2379 = vlaneseq
    %v2380 = vshrl.u32 %v2379, 7
    %v2381 = vsub.s32 %v2378, %v2380
    %v2382 = vrot.slane %v2375, %v2381
    %v2383 = vcombine.low %v2358, %v2366
    %v2384 = vcombine.high %v2358, %v2366
    %v2386 = vunpack.c.l.s4 1934713408
    %v2387 = vunpack.c.0.s8 %v2386
    %v2388 = vlaneseq
    %v2389 = vshrl.u32 %v2388, 7
    %v2390 = vsub.s32 %v2387, %v2389
    %v2391 = vrot.slane %v2383, %v2390
    %v2393 = vunpack.c.l.s4 1934713408
    %v2394 = vunpack.c.0.s8 %v2393
    %v2395 = vlaneseq
    %v2396 = vshrl.u32 %v2395, 7
    %v2397 = vsub.s32 %v2394, %v2396
    %v2398 = vrot.slane %v2384, %v2397
    %v2399 = vcombine.low %v2374, %v2382
    %v2400 = vcombine.high %v2374, %v2382
    %v2402 = vunpack.c.l.s4 1934713408
    %v2403 = vunpack.c.0.s8 %v2402
    %v2404 = vlaneseq
    %v2405 = vshrl.u32 %v2404, 7
    %v2406 = vsub.s32 %v2403, %v2405
    %v2407 = vrot.slane %v2399, %v2406
    %v2409 = vunpack.c.l.s4 1934713408
    %v2410 = vunpack.c.0.s8 %v2409
    %v2411 = vlaneseq
    %v2412 = vshrl.u32 %v2411, 7
    %v2413 = vsub.s32 %v2410, %v2412
    %v2414 = vrot.slane %v2400, %v2413
    %v2415 = vcombine.low %v2391, %v2407
    %v2416 = vcombine.high %v2391, %v2407
    %v2417 = vcombine.low %v2398, %v2414
    %v2418 = vcombine.high %v2398, %v2414
    %2421 = vrot.lane.b32.xlu0 %v2348, 32
    %v2422 = vpop.permute.xlu0 %2421
    %2423 = vrot.lane.b32.xlu0 %v2416, 32
    %v2424 = vpop.permute.xlu0 %2423
    %2429 = vrot.lane.b32.xlu0 %v2349, 64
    %v2430 = vpop.permute.xlu0 %2429
    %2431 = vrot.lane.b32.xlu0 %v2417, 64
    %v2432 = vpop.permute.xlu0 %2431
    %2437 = vrot.lane.b32.xlu0 %v2350, 96
    %v2438 = vpop.permute.xlu0 %2437
    %2439 = vrot.lane.b32.xlu0 %v2418, 96
    %v2440 = vpop.permute.xlu0 %2439
    %v2443 = vsel %vm1304, %v2347, %v2422
    %v2444 = vsel %vm1304, %v2415, %v2424
    %vm2445 = vcmask 523264
    %v2446 = vsel %vm2445, %v2443, %v2430
    %v2447 = vsel %vm2445, %v2444, %v2432
    %vm2448 = vcmask 785408
    %v2449 = vsel %vm2448, %v2446, %v2438
    %v2450 = vsel %vm2448, %v2447, %v2440
    %v2451 = vpack.c.bf16 %v2450, %v2449
    %v2452 = vld [vmem:[#allocation7] sm:$0xf]
    %v2453 = vld [vmem:[#allocation7 + $0x4] sm:$0xf]
    %v2454 = vld [vmem:[#allocation7 + $0x8] sm:$0xf]
    %v2455 = vld [vmem:[#allocation7 + $0xc] sm:$0xf]
    %v2456 = vld [vmem:[#allocation7 + $0x10] sm:$0xf]
    %v2457 = vld [vmem:[#allocation7 + $0x14] sm:$0xf]
    %v2458 = vld [vmem:[#allocation7 + $0x18] sm:$0xf]
    %v2459 = vld [vmem:[#allocation7 + $0x1c] sm:$0xf]
    %v2460 = vld [vmem:[#allocation7 + $0x20] sm:$0xf]
    %v2461 = vld [vmem:[#allocation7 + $0x24] sm:$0xf]
    %v2462 = vld [vmem:[#allocation7 + $0x28] sm:$0xf]
    %v2463 = vld [vmem:[#allocation7 + $0x2c] sm:$0xf]
    %v2464 = vld [vmem:[#allocation7 + $0x30] sm:$0xf]
    %v2465 = vld [vmem:[#allocation7 + $0x34] sm:$0xf]
    %v2466 = vld [vmem:[#allocation7 + $0x38] sm:$0xf]
    %v2467 = vld [vmem:[#allocation7 + $0x3c] sm:$0xf]
    %v2469 = vlaneseq
    %v2470 = vshrl.u32 %v2469, 7
    %v2471 = vsub.s32 0, %v2470
    %v2472 = vrot.slane %v115, %v2471
    %v2490 = vunpack.c.l.b16 %v2452
    %v2491 = vunpack.c.l.b16 %v2453
    %v2492 = vunpack.c.l.b16 %v2454
    %v2493 = vunpack.c.l.b16 %v2455
    %v2494 = vunpack.c.l.b16 %v2456
    %v2495 = vunpack.c.l.b16 %v2457
    %v2496 = vunpack.c.l.b16 %v2458
    %v2497 = vunpack.c.l.b16 %v2459
    %v2498 = vunpack.c.l.b16 %v2460
    %v2499 = vunpack.c.l.b16 %v2461
    %v2500 = vunpack.c.l.b16 %v2462
    %v2501 = vunpack.c.l.b16 %v2463
    %v2502 = vunpack.c.l.b16 %v2464
    %v2503 = vunpack.c.l.b16 %v2465
    %v2504 = vunpack.c.l.b16 %v2466
    %v2505 = vunpack.c.l.b16 %v2467
    %v2506 = vpack.c.b16 %v2491, %v2490
    %v2507 = vpack.c.b16 %v2493, %v2492
    %v2508 = vpack.c.b16 %v2495, %v2494
    %v2509 = vpack.c.b16 %v2497, %v2496
    %v2510 = vpack.c.b16 %v2499, %v2498
    %v2511 = vpack.c.b16 %v2501, %v2500
    %v2512 = vpack.c.b16 %v2503, %v2502
    %v2513 = vpack.c.b16 %v2505, %v2504
    %2522 = vmatprep.subr.bf16.mxu0 0
    %2523 = vmatpush1.bf16.msra.mxu0 %v2506
    %2524 = vmatprep.subr.bf16.mxu0 0
    %2525 = vmatpush1.bf16.msra.mxu0 %v2507
    %2526 = vmatprep.subr.bf16.mxu0 0
    %2527 = vmatpush1.bf16.msra.mxu0 %v2508
    %2528 = vmatprep.subr.bf16.mxu0 0
    %2529 = vmatpush1.bf16.msra.mxu0 %v2509
    %2530 = vmatprep.subr.bf16.mxu0 0
    %2531 = vmatpush1.bf16.msra.mxu0 %v2510
    %2532 = vmatprep.subr.bf16.mxu0 0
    %2533 = vmatpush1.bf16.msra.mxu0 %v2511
    %2534 = vmatprep.subr.bf16.mxu0 0
    %2535 = vmatpush1.bf16.msra.mxu0 %v2512
    %2536 = vmatprep.subr.bf16.mxu0 0
    %2537 = vmatpush1.bf16.msra.mxu0 %v2513
    %2538 = vmatprep.subr.bf16.mxu0 0
    %2539 = vmatpush1.bf16.msra.mxu0 0
    %2540 = vmatprep.subr.bf16.mxu0 0
    %2541 = vmatpush1.bf16.msra.mxu0 0
    %2542 = vmatprep.subr.bf16.mxu0 0
    %2543 = vmatpush1.bf16.msra.mxu0 0
    %2544 = vmatprep.subr.bf16.mxu0 0
    %2545 = vmatpush1.bf16.msra.mxu0 0
    %2546 = vmatprep.subr.bf16.mxu0 0
    %2547 = vmatpush1.bf16.msra.mxu0 0
    %2548 = vmatprep.subr.bf16.mxu0 0
    %2549 = vmatpush1.bf16.msra.mxu0 0
    %2550 = vmatprep.subr.bf16.mxu0 0
    %2551 = vmatpush1.bf16.msra.mxu0 0
    %2552 = vmatprep.subr.bf16.mxu0 0
    %2553 = vmatpush1.bf16.msra.mxu0 0
    %2554 = vmatprep.mubr.bf16.mxu0 0
    %2555 = vmatmul.mubr.bf16.gmra.mrb[0].mxu0 %v2451
    %v2556 = vpop.f32.mrb[0].mxu0
    %v2557 = vadd.f32 %v2472, %v2556
    %v2558 = vpop.f32.mrb[0].mxu0
    %v2559 = vpop.f32.mrb[0].mxu0
    %v2560 = vadd.f32 %v2472, %v2559
    %v2561 = vpop.f32.mrb[0].mxu0
    %2562 = vdwg.mxu0
    %v2563 = vadd.f32 %v118, %v2557
    %v2564 = vadd.f32 %v119, %v2560
    %2565 = vadd.xlane.f32.xlu0 %v2563
    %v2566 = vpop.xlane.xlu0 %2565
    %2567 = vadd.xlane.f32.xlu0 %v2564
    %v2568 = vpop.xlane.xlu0 %2567
    %v2569 = vmul.f32 %v2566, %v124
    %v2570 = vmul.f32 %v2568, %v124
    %v2571 = vsub.f32 %v2563, %v2569
    %v2572 = vsub.f32 %v2564, %v2570
    %v2573 = vmul.f32 %v2571, %v2571
    %v2574 = vmul.f32 %v2572, %v2572
    %2575 = vadd.xlane.f32.xlu0 %v2573
    %v2576 = vpop.xlane.xlu0 %2575
    %2577 = vadd.xlane.f32.xlu0 %v2574
    %v2578 = vpop.xlane.xlu0 %2577
    %v2579 = vmul.f32 %v2576, %v124
    %v2580 = vmul.f32 %v2578, %v124
    %v2581 = vadd.f32 %v2579, 1e-05
    %v2582 = vadd.f32 %v2580, 1e-05
    %v2583 = vrsqrt.pop %v2581
    %v2584 = vrsqrt.pop %v2582
    %v2585 = vmul.f32 %v2571, %v2583
    %v2586 = vmul.f32 %v2572, %v2584
    %v2588 = vlaneseq
    %v2589 = vshrl.u32 %v2588, 7
    %v2590 = vsub.s32 0, %v2589
    %v2591 = vrot.slane %v113, %v2590
    %v2593 = vmul.f32 %v2585, %v2591
    %v2594 = vmul.f32 %v2586, %v2591
    %v2596 = vlaneseq
    %v2597 = vshrl.u32 %v2596, 7
    %v2598 = vsub.s32 0, %v2597
    %v2599 = vrot.slane %v114, %v2598
    %v2601 = vadd.f32 %v2593, %v2599
    %v2602 = vadd.f32 %v2594, %v2599
    %v2603 = vpack.c.bf16 %v2602, %v2601
    %v2604 = vld [vmem:[#allocation8] sm:$0xff]
    %v2605 = vld [vmem:[#allocation8 + $0x8] sm:$0xff]
    %v2606 = vld [vmem:[#allocation8 + $0x10] sm:$0xff]
    %v2607 = vld [vmem:[#allocation8 + $0x18] sm:$0xff]
    %v2608 = vld [vmem:[#allocation8 + $0x20] sm:$0xff]
    %v2609 = vld [vmem:[#allocation8 + $0x28] sm:$0xff]
    %v2610 = vld [vmem:[#allocation8 + $0x30] sm:$0xff]
    %v2611 = vld [vmem:[#allocation8 + $0x38] sm:$0xff]
    %v2612 = vld [vmem:[#allocation8 + $0x40] sm:$0xff]
    %v2613 = vld [vmem:[#allocation8 + $0x48] sm:$0xff]
    %v2614 = vld [vmem:[#allocation8 + $0x50] sm:$0xff]
    %v2615 = vld [vmem:[#allocation8 + $0x58] sm:$0xff]
    %v2616 = vld [vmem:[#allocation8 + $0x60] sm:$0xff]
    %v2617 = vld [vmem:[#allocation8 + $0x68] sm:$0xff]
    %v2618 = vld [vmem:[#allocation8 + $0x70] sm:$0xff]
    %v2619 = vld [vmem:[#allocation8 + $0x78] sm:$0xff]
    %v2621 = vlaneseq
    %v2622 = vshrl.u32 %v2621, 7
    %v2623 = vsub.s32 0, %v2622
    %v2624 = vrot.slane %v116, %v2623
    %v2625 = vlaneseq
    %v2626 = vshrl.u32 %v2625, 7
    %v2627 = vsub.s32 1, %v2626
    %v2628 = vrot.slane %v116, %v2627
    %v2647 = vunpack.c.l.b16 %v2604
    %v2648 = vunpack.c.h.b16 %v2604
    %v2649 = vunpack.c.l.b16 %v2605
    %v2650 = vunpack.c.h.b16 %v2605
    %v2651 = vunpack.c.l.b16 %v2606
    %v2652 = vunpack.c.h.b16 %v2606
    %v2653 = vunpack.c.l.b16 %v2607
    %v2654 = vunpack.c.h.b16 %v2607
    %v2655 = vunpack.c.l.b16 %v2608
    %v2656 = vunpack.c.h.b16 %v2608
    %v2657 = vunpack.c.l.b16 %v2609
    %v2658 = vunpack.c.h.b16 %v2609
    %v2659 = vunpack.c.l.b16 %v2610
    %v2660 = vunpack.c.h.b16 %v2610
    %v2661 = vunpack.c.l.b16 %v2611
    %v2662 = vunpack.c.h.b16 %v2611
    %v2663 = vunpack.c.l.b16 %v2612
    %v2664 = vunpack.c.h.b16 %v2612
    %v2665 = vunpack.c.l.b16 %v2613
    %v2666 = vunpack.c.h.b16 %v2613
    %v2667 = vunpack.c.l.b16 %v2614
    %v2668 = vunpack.c.h.b16 %v2614
    %v2669 = vunpack.c.l.b16 %v2615
    %v2670 = vunpack.c.h.b16 %v2615
    %v2671 = vunpack.c.l.b16 %v2616
    %v2672 = vunpack.c.h.b16 %v2616
    %v2673 = vunpack.c.l.b16 %v2617
    %v2674 = vunpack.c.h.b16 %v2617
    %v2675 = vunpack.c.l.b16 %v2618
    %v2676 = vunpack.c.h.b16 %v2618
    %v2677 = vunpack.c.l.b16 %v2619
    %v2678 = vunpack.c.h.b16 %v2619
    %v2679 = vpack.c.b16 %v2649, %v2647
    %v2680 = vpack.c.b16 %v2650, %v2648
    %v2681 = vpack.c.b16 %v2653, %v2651
    %v2682 = vpack.c.b16 %v2654, %v2652
    %v2683 = vpack.c.b16 %v2657, %v2655
    %v2684 = vpack.c.b16 %v2658, %v2656
    %v2685 = vpack.c.b16 %v2661, %v2659
    %v2686 = vpack.c.b16 %v2662, %v2660
    %v2687 = vpack.c.b16 %v2665, %v2663
    %v2688 = vpack.c.b16 %v2666, %v2664
    %v2689 = vpack.c.b16 %v2669, %v2667
    %v2690 = vpack.c.b16 %v2670, %v2668
    %v2691 = vpack.c.b16 %v2673, %v2671
    %v2692 = vpack.c.b16 %v2674, %v2672
    %v2693 = vpack.c.b16 %v2677, %v2675
    %v2694 = vpack.c.b16 %v2678, %v2676
    %2711 = vmatprep.subr.bf16.mxu0 %v2680
    %2712 = vmatpush1.bf16.msra.mxu0 %v2679
    %2713 = vmatprep.subr.bf16.mxu0 %v2682
    %2714 = vmatpush1.bf16.msra.mxu0 %v2681
    %2715 = vmatprep.subr.bf16.mxu0 %v2684
    %2716 = vmatpush1.bf16.msra.mxu0 %v2683
    %2717 = vmatprep.subr.bf16.mxu0 %v2686
    %2718 = vmatpush1.bf16.msra.mxu0 %v2685
    %2719 = vmatprep.subr.bf16.mxu0 %v2688
    %2720 = vmatpush1.bf16.msra.mxu0 %v2687
    %2721 = vmatprep.subr.bf16.mxu0 %v2690
    %2722 = vmatpush1.bf16.msra.mxu0 %v2689
    %2723 = vmatprep.subr.bf16.mxu0 %v2692
    %2724 = vmatpush1.bf16.msra.mxu0 %v2691
    %2725 = vmatprep.subr.bf16.mxu0 %v2694
    %2726 = vmatpush1.bf16.msra.mxu0 %v2693
    %2727 = vmatprep.subr.bf16.mxu0 0
    %2728 = vmatpush1.bf16.msra.mxu0 0
    %2729 = vmatprep.subr.bf16.mxu0 0
    %2730 = vmatpush1.bf16.msra.mxu0 0
    %2731 = vmatprep.subr.bf16.mxu0 0
    %2732 = vmatpush1.bf16.msra.mxu0 0
    %2733 = vmatprep.subr.bf16.mxu0 0
    %2734 = vmatpush1.bf16.msra.mxu0 0
    %2735 = vmatprep.subr.bf16.mxu0 0
    %2736 = vmatpush1.bf16.msra.mxu0 0
    %2737 = vmatprep.subr.bf16.mxu0 0
    %2738 = vmatpush1.bf16.msra.mxu0 0
    %2739 = vmatprep.subr.bf16.mxu0 0
    %2740 = vmatpush1.bf16.msra.mxu0 0
    %2741 = vmatprep.subr.bf16.mxu0 0
    %2742 = vmatpush1.bf16.msra.mxu0 0
    %2743 = vmatprep.mubr.bf16.mxu0 0
    %2744 = vmatmul.mubr.bf16.gmra.mrb[0].mxu0 %v2603
    %v2745 = vpop.f32.mrb[0].mxu0
    %v2746 = vadd.f32 %v2624, %v2745
    %v2747 = vpop.f32.mrb[0].mxu0
    %v2748 = vadd.f32 %v2628, %v2747
    %v2749 = vpop.f32.mrb[0].mxu0
    %v2750 = vadd.f32 %v2624, %v2749
    %v2751 = vpop.f32.mrb[0].mxu0
    %v2752 = vadd.f32 %v2628, %v2751
    %2753 = vdwg.mxu0
    %v2754 = vmul.f32 %v2746, 0.5
    %v2755 = vmul.f32 %v2748, 0.5
    %v2756 = vmul.f32 %v2750, 0.5
    %v2757 = vmul.f32 %v2752, 0.5
    %v2758 = vmul.f32 %v2746, 0.70710677
    %v2759 = vmul.f32 %v2748, 0.70710677
    %v2760 = vmul.f32 %v2750, 0.70710677
    %v2761 = vmul.f32 %v2752, 0.70710677
    %v2762 = verf.f32.pop %v2758
    %v2763 = verf.f32.pop %v2759
    %v2764 = verf.f32.pop %v2760
    %v2765 = verf.f32.pop %v2761
    %v2766 = vadd.f32 %v2762, 1.0
    %v2767 = vadd.f32 %v2763, 1.0
    %v2768 = vadd.f32 %v2764, 1.0
    %v2769 = vadd.f32 %v2765, 1.0
    %v2770 = vmul.f32 %v2754, %v2766
    %v2771 = vmul.f32 %v2755, %v2767
    %v2772 = vmul.f32 %v2756, %v2768
    %v2773 = vmul.f32 %v2757, %v2769
    %v2774 = vpack.c.bf16 %v2772, %v2770
    %v2775 = vpack.c.bf16 %v2773, %v2771
    %v2776 = vld [vmem:[#allocation10] sm:$0xf]
    %v2777 = vld [vmem:[#allocation10 + $0x4] sm:$0xf]
    %v2778 = vld [vmem:[#allocation10 + $0x8] sm:$0xf]
    %v2779 = vld [vmem:[#allocation10 + $0xc] sm:$0xf]
    %v2780 = vld [vmem:[#allocation10 + $0x10] sm:$0xf]
    %v2781 = vld [vmem:[#allocation10 + $0x14] sm:$0xf]
    %v2782 = vld [vmem:[#allocation10 + $0x18] sm:$0xf]
    %v2783 = vld [vmem:[#allocation10 + $0x1c] sm:$0xf]
    %v2784 = vld [vmem:[#allocation10 + $0x20] sm:$0xf]
    %v2785 = vld [vmem:[#allocation10 + $0x24] sm:$0xf]
    %v2786 = vld [vmem:[#allocation10 + $0x28] sm:$0xf]
    %v2787 = vld [vmem:[#allocation10 + $0x2c] sm:$0xf]
    %v2788 = vld [vmem:[#allocation10 + $0x30] sm:$0xf]
    %v2789 = vld [vmem:[#allocation10 + $0x34] sm:$0xf]
    %v2790 = vld [vmem:[#allocation10 + $0x38] sm:$0xf]
    %v2791 = vld [vmem:[#allocation10 + $0x3c] sm:$0xf]
    %v2792 = vld [vmem:[#allocation10 + $0x40] sm:$0xf]
    %v2793 = vld [vmem:[#allocation10 + $0x44] sm:$0xf]
    %v2794 = vld [vmem:[#allocation10 + $0x48] sm:$0xf]
    %v2795 = vld [vmem:[#allocation10 + $0x4c] sm:$0xf]
    %v2796 = vld [vmem:[#allocation10 + $0x50] sm:$0xf]
    %v2797 = vld [vmem:[#allocation10 + $0x54] sm:$0xf]
    %v2798 = vld [vmem:[#allocation10 + $0x58] sm:$0xf]
    %v2799 = vld [vmem:[#allocation10 + $0x5c] sm:$0xf]
    %v2800 = vld [vmem:[#allocation10 + $0x60] sm:$0xf]
    %v2801 = vld [vmem:[#allocation10 + $0x64] sm:$0xf]
    %v2802 = vld [vmem:[#allocation10 + $0x68] sm:$0xf]
    %v2803 = vld [vmem:[#allocation10 + $0x6c] sm:$0xf]
    %v2804 = vld [vmem:[#allocation10 + $0x70] sm:$0xf]
    %v2805 = vld [vmem:[#allocation10 + $0x74] sm:$0xf]
    %v2806 = vld [vmem:[#allocation10 + $0x78] sm:$0xf]
    %v2807 = vld [vmem:[#allocation10 + $0x7c] sm:$0xf]
    %v2809 = vlaneseq
    %v2810 = vshrl.u32 %v2809, 7
    %v2811 = vsub.s32 0, %v2810
    %v2812 = vrot.slane %v117, %v2811
    %v2846 = vunpack.c.l.b16 %v2776
    %v2847 = vunpack.c.l.b16 %v2777
    %v2848 = vunpack.c.l.b16 %v2778
    %v2849 = vunpack.c.l.b16 %v2779
    %v2850 = vunpack.c.l.b16 %v2780
    %v2851 = vunpack.c.l.b16 %v2781
    %v2852 = vunpack.c.l.b16 %v2782
    %v2853 = vunpack.c.l.b16 %v2783
    %v2854 = vunpack.c.l.b16 %v2784
    %v2855 = vunpack.c.l.b16 %v2785
    %v2856 = vunpack.c.l.b16 %v2786
    %v2857 = vunpack.c.l.b16 %v2787
    %v2858 = vunpack.c.l.b16 %v2788
    %v2859 = vunpack.c.l.b16 %v2789
    %v2860 = vunpack.c.l.b16 %v2790
    %v2861 = vunpack.c.l.b16 %v2791
    %v2862 = vunpack.c.l.b16 %v2792
    %v2863 = vunpack.c.l.b16 %v2793
    %v2864 = vunpack.c.l.b16 %v2794
    %v2865 = vunpack.c.l.b16 %v2795
    %v2866 = vunpack.c.l.b16 %v2796
    %v2867 = vunpack.c.l.b16 %v2797
    %v2868 = vunpack.c.l.b16 %v2798
    %v2869 = vunpack.c.l.b16 %v2799
    %v2870 = vunpack.c.l.b16 %v2800
    %v2871 = vunpack.c.l.b16 %v2801
    %v2872 = vunpack.c.l.b16 %v2802
    %v2873 = vunpack.c.l.b16 %v2803
    %v2874 = vunpack.c.l.b16 %v2804
    %v2875 = vunpack.c.l.b16 %v2805
    %v2876 = vunpack.c.l.b16 %v2806
    %v2877 = vunpack.c.l.b16 %v2807
    %v2878 = vpack.c.b16 %v2847, %v2846
    %v2879 = vpack.c.b16 %v2849, %v2848
    %v2880 = vpack.c.b16 %v2851, %v2850
    %v2881 = vpack.c.b16 %v2853, %v2852
    %v2882 = vpack.c.b16 %v2855, %v2854
    %v2883 = vpack.c.b16 %v2857, %v2856
    %v2884 = vpack.c.b16 %v2859, %v2858
    %v2885 = vpack.c.b16 %v2861, %v2860
    %v2886 = vpack.c.b16 %v2863, %v2862
    %v2887 = vpack.c.b16 %v2865, %v2864
    %v2888 = vpack.c.b16 %v2867, %v2866
    %v2889 = vpack.c.b16 %v2869, %v2868
    %v2890 = vpack.c.b16 %v2871, %v2870
    %v2891 = vpack.c.b16 %v2873, %v2872
    %v2892 = vpack.c.b16 %v2875, %v2874
    %v2893 = vpack.c.b16 %v2877, %v2876
    %2910 = vmatprep.subr.bf16.mxu0 0
    %2911 = vmatpush1.bf16.msra.mxu0 %v2878
    %2912 = vmatprep.subr.bf16.mxu0 0
    %2913 = vmatpush1.bf16.msra.mxu0 %v2879
    %2914 = vmatprep.subr.bf16.mxu0 0
    %2915 = vmatpush1.bf16.msra.mxu0 %v2880
    %2916 = vmatprep.subr.bf16.mxu0 0
    %2917 = vmatpush1.bf16.msra.mxu0 %v2881
    %2918 = vmatprep.subr.bf16.mxu0 0
    %2919 = vmatpush1.bf16.msra.mxu0 %v2882
    %2920 = vmatprep.subr.bf16.mxu0 0
    %2921 = vmatpush1.bf16.msra.mxu0 %v2883
    %2922 = vmatprep.subr.bf16.mxu0 0
    %2923 = vmatpush1.bf16.msra.mxu0 %v2884
    %2924 = vmatprep.subr.bf16.mxu0 0
    %2925 = vmatpush1.bf16.msra.mxu0 %v2885
    %2926 = vmatprep.subr.bf16.mxu0 0
    %2927 = vmatpush1.bf16.msra.mxu0 %v2886
    %2928 = vmatprep.subr.bf16.mxu0 0
    %2929 = vmatpush1.bf16.msra.mxu0 %v2887
    %2930 = vmatprep.subr.bf16.mxu0 0
    %2931 = vmatpush1.bf16.msra.mxu0 %v2888
    %2932 = vmatprep.subr.bf16.mxu0 0
    %2933 = vmatpush1.bf16.msra.mxu0 %v2889
    %2934 = vmatprep.subr.bf16.mxu0 0
    %2935 = vmatpush1.bf16.msra.mxu0 %v2890
    %2936 = vmatprep.subr.bf16.mxu0 0
    %2937 = vmatpush1.bf16.msra.mxu0 %v2891
    %2938 = vmatprep.subr.bf16.mxu0 0
    %2939 = vmatpush1.bf16.msra.mxu0 %v2892
    %2940 = vmatprep.subr.bf16.mxu0 0
    %2941 = vmatpush1.bf16.msra.mxu0 %v2893
    %2942 = vmatprep.mubr.bf16.mxu0 %v2775
    %2943 = vmatmul.mubr.bf16.gmra.mrb[0].mxu0 %v2774
    %v2944 = vpop.f32.mrb[0].mxu0
    %v2945 = vadd.f32 %v2812, %v2944
    %v2946 = vpop.f32.mrb[0].mxu0
    %v2947 = vpop.f32.mrb[0].mxu0
    %v2948 = vadd.f32 %v2812, %v2947
    %v2949 = vpop.f32.mrb[0].mxu0
    %2950 = vdwg.mxu0
    %v2951 = vadd.f32 %v2563, %v2945
    %v2952 = vadd.f32 %v2564, %v2948
    %2953 = vst [vmem:[#allocation11] sm:$0xff] %v2951
    %2954 = vst [vmem:[#allocation11 + $0x8] sm:$0xff] %v2952
    // Predicated region
    $region70: #{tpu_custom_call.1} parent=1 // pred_check
      _
    $region71: #{tpu_custom_call.1} parent=1 // pred_check_branch
      %2956 = sbr.rel (0) target = $region73
    $region72: #{tpu_custom_call.1} parent=1 // pred_region
      %s2958 = ssub.s32 256, 256
      %2959 = vsyncadd [#allocation4], %s2958
      %s2960 = sshll.u32 [#allocation11], 4
      %s2961 = int_to_ptr.vmem [resolvable:$true] %s2960
      %2966 = dma.vmem_to_hbm [thread:$0]  %s2961, 256, %s12, [#allocation4], 128, 128, 8
    $region73: #{tpu_custom_call.1} parent=1 // pred_fallthru
      _
    // Predicated region
    $region74: #{tpu_custom_call.1} parent=1 // pred_check
      _
    $region75: #{tpu_custom_call.1} parent=1 // pred_check_branch
      %2968 = sbr.rel (0) target = $region77
    $region76: #{tpu_custom_call.1} parent=1 // pred_region
      %2969 = dma.done [#allocation4], 256
    $region77: #{tpu_custom_call.1} parent=1 // pred_fallthru
      _
    %2970 = vsyncpa [#allocation3], 1
    %2971 = vsyncpa [#allocation6], 1
    %2972 = vsyncpa [#allocation9], 1
    %2973 = vsyncpa [#allocation4], 1

</llo_original>
